<compile_context>
chip_gen: v7x
topology: tpu7x:2x2x1
jax: 0.10.0
libtpu: 0.0.40
codegen_flags: <defaults>
</compile_context>

<pallas_src>
import jax
import jax.numpy as jnp
from jax.experimental import pallas as pl
from jax.experimental.pallas import tpu as pltpu


# ----------------------------- Pallas kernel -------------------------------

def _bottleneck_fused_kernel(x_ref, w1_ref, t1_ref, w2_ref, t2_ref,
                             w3_ref, t3_ref, o_ref, im2col_ref):
    """Fused Bottleneck on one NHWC image (stride=1, no downsample).

    x_ref:      (1, H, W, Cin)   activation tile, compute dtype
    w1_ref:     (Cin, C1)        conv1 1x1 weight, BN1 scale folded in
    t1_ref:     (1, C1)          BN1 shift (f32)
    w2_ref:     (9*C1, C2)       conv2 3x3 weight K-packed (kh, kw, c1) rows
    t2_ref:     (1, C2)          BN2 shift (f32)
    w3_ref:     (C2, C3)         conv3 1x1 weight, BN3 scale folded in
    t3_ref:     (1, C3)          BN3 shift (f32)
    o_ref:      (1, H, W, C3)    output tile
    im2col_ref: (H*W, 9*C1)      VMEM scratch: K-packed conv2 operand
    """
    _, H, W, Cin = x_ref.shape
    C1 = w1_ref.shape[1]
    C3 = w3_ref.shape[1]
    cdt = im2col_ref.dtype
    HW = H * W

    # ---- conv1 (1x1) + BN1 + ReLU -> flat (H*W, C1) in compute dtype -------
    h1 = jnp.dot(x_ref[0].reshape(HW, Cin), w1_ref[...],
                 preferred_element_type=jnp.float32)
    h1 = jnp.maximum(h1 + t1_ref[...], 0.0).astype(cdt)

    # ---- conv2 (3x3, stride 1, pad 1): im2col via XLU rolls + border masks -
    # Output-pixel coordinates (to mask the implicit zero padding).
    row_idx = jax.lax.broadcasted_iota(jnp.int32, (H, W, C1), 0).reshape(HW, C1)
    col_idx = jax.lax.broadcasted_iota(jnp.int32, (H, W, C1), 1).reshape(HW, C1)

    for kh in range(3):
        dh = kh - 1
        h_ok = None if dh == 0 else (row_idx >= 1 if dh < 0 else row_idx <= H - 2)
        for kw in range(3):
            dw = kw - 1
            w_ok = None if dw == 0 else (col_idx >= 1 if dw < 0 else col_idx <= W - 2)
            if h_ok is None:
                ok = w_ok
            elif w_ok is None:
                ok = h_ok
            else:
                ok = jnp.logical_and(h_ok, w_ok)

            d = dh * W + dw                       # flat-index offset of this tap
            tap = h1 if d == 0 else pltpu.roll(h1, shift=(-d) % HW, axis=0)
            if ok is not None:
                tap = jnp.where(ok, tap, jnp.zeros_like(tap))
            t = kh * 3 + kw
            im2col_ref[:, t * C1:(t + 1) * C1] = tap

    # ---- single MXU dot, K = 9*C1; fuse BN2 shift + ReLU + cast on drain ---
    h2 = jnp.dot(im2col_ref[...], w2_ref[...], preferred_element_type=jnp.float32)
    h2 = jnp.maximum(h2 + t2_ref[...], 0.0).astype(cdt)

    # ---- conv3 (1x1) + BN3 + residual add + ReLU ---------------------------
    # Residual is re-read from the Ref here (not kept live through conv2).
    y = jnp.dot(h2, w3_ref[...], preferred_element_type=jnp.float32)
    y = y + t3_ref[...] + x_ref[0].reshape(HW, Cin).astype(jnp.float32)
    o_ref[0] = jnp.maximum(y, 0.0).reshape(H, W, C3).astype(o_ref.dtype)


# ------------------------------ BN folding ----------------------------------

def _fold_bn(conv_bias, gamma, beta, mean, var, eps=1e-5):
    scale = gamma / jnp.sqrt(var + eps)
    shift = beta + (conv_bias - mean) * scale
    return scale, shift


def _vmem_limit_bytes():
    """Generation-dependent scoped-VMEM budget (~3/4 of physical)."""
    try:
        cap = pltpu.get_tpu_info().vmem_capacity_bytes
    except Exception:
        cap = None
    if not cap:
        return 32 * 1024 * 1024            # safe everywhere
    return int(min(cap * 3 // 4, 96 * 1024 * 1024))


# ------------------------------ forward wrapper ------------------------------

def bottleneck_forward(x_nchw, params, *, compute_dtype=jnp.bfloat16, eps=1e-5):
    """Bottleneck forward (stride=1, i_downsample=None). NCHW in -> NCHW out."""
    x = jnp.transpose(x_nchw, (0, 2, 3, 1))                  # -> NHWC
    N, H, W, Cin = x.shape
    out_dtype = x.dtype

    C1 = params["conv1_w"].shape[1]
    C2 = params["conv2_w"].shape[3]
    C3 = params["conv3_w"].shape[1]
    assert Cin == C3, "identity residual requires in_channels == out_channels*4"

    s1, t1 = _fold_bn(params["conv1_b"], params["bn1_gamma"], params["bn1_beta"],
                      params["bn1_mean"], params["bn1_var"], eps)
    s2, t2 = _fold_bn(params["conv2_b"], params["bn2_gamma"], params["bn2_beta"],
                      params["bn2_mean"], params["bn2_var"], eps)
    s3, t3 = _fold_bn(params["conv3_b"], params["bn3_gamma"], params["bn3_beta"],
                      params["bn3_mean"], params["bn3_var"], eps)

    # Fold BN scale into conv weights; only the shift stays in the epilogue.
    w1 = (params["conv1_w"] * s1[None, :]).astype(compute_dtype)        # (Cin, C1)
    # conv2 (3,3,C1,C2) -> K-packed (9*C1, C2); row order (kh, kw, c1) matches
    # the im2col tap packing inside the kernel.
    w2 = (params["conv2_w"] * s2).astype(compute_dtype).reshape(9 * C1, C2)
    w3 = (params["conv3_w"] * s3[None, :]).astype(compute_dtype)        # (C2, C3)
    t1 = t1.reshape(1, C1).astype(jnp.float32)
    t2 = t2.reshape(1, C2).astype(jnp.float32)
    t3 = t3.reshape(1, C3).astype(jnp.float32)

    x_in = x.astype(compute_dtype)

    itemsize = jnp.dtype(compute_dtype).itemsize
    flops = 2 * N * H * W * (Cin * C1 + 9 * C1 * C2 + C2 * C3)
    bytes_accessed = (x_in.size * itemsize
                      + (w1.size + w2.size + w3.size) * itemsize
                      + (t1.size + t2.size + t3.size) * 4
                      + N * H * W * C3 * jnp.dtype(out_dtype).itemsize)

    out = pl.pallas_call(
        _bottleneck_fused_kernel,
        out_shape=jax.ShapeDtypeStruct((N, H, W, C3), out_dtype),
        grid=(N,),
        in_specs=[
            pl.BlockSpec((1, H, W, Cin), lambda n: (n, 0, 0, 0)),   # x (1 image/step)
            pl.BlockSpec((Cin, C1), lambda n: (0, 0)),              # w1
            pl.BlockSpec((1, C1), lambda n: (0, 0)),                # t1
            pl.BlockSpec((9 * C1, C2), lambda n: (0, 0)),           # w2 (K-packed)
            pl.BlockSpec((1, C2), lambda n: (0, 0)),                # t2
            pl.BlockSpec((C2, C3), lambda n: (0, 0)),               # w3
            pl.BlockSpec((1, C3), lambda n: (0, 0)),                # t3
        ],
        out_specs=pl.BlockSpec((1, H, W, C3), lambda n: (n, 0, 0, 0)),
        scratch_shapes=[
            pltpu.VMEM((H * W, 9 * C1), compute_dtype),             # im2col buffer
        ],
        compiler_params=pltpu.CompilerParams(
            dimension_semantics=("parallel",),
            vmem_limit_bytes=_vmem_limit_bytes()),
        cost_estimate=pl.CostEstimate(flops=flops, transcendentals=0,
                                      bytes_accessed=bytes_accessed),
    )(x_in, w1, t1, w2, t2, w3, t3)

    return jnp.transpose(out, (0, 3, 1, 2))                         # -> NCHW


# ------------------------------ parameter init -------------------------------

def init_bottleneck_params(key, in_channels, out_channels, expansion=4):
    c1, c2, c3 = out_channels, out_channels, out_channels * expansion
    keys = jax.random.split(key, 9)
    p = {
        # weights stored pre-transposed for NHWC kernels:
        "conv1_w": 0.1 * jax.random.normal(keys[0], (in_channels, c1), jnp.float32),
        "conv1_b": 0.1 * jax.random.normal(keys[1], (c1,), jnp.float32),
        "conv2_w": 0.1 * jax.random.normal(keys[2], (3, 3, c1, c2), jnp.float32),
        "conv2_b": 0.1 * jax.random.normal(keys[3], (c2,), jnp.float32),
        "conv3_w": 0.1 * jax.random.normal(keys[4], (c2, c3), jnp.float32),
        "conv3_b": 0.1 * jax.random.normal(keys[5], (c3,), jnp.float32),
    }
    for i, c in zip((1, 2, 3), (c1, c2, c3)):
        kg, kb, km, kv = jax.random.split(keys[5 + i], 4)
        p[f"bn{i}_gamma"] = 1.0 + 0.1 * jax.random.normal(kg, (c,), jnp.float32)
        p[f"bn{i}_beta"] = 0.1 * jax.random.normal(kb, (c,), jnp.float32)
        p[f"bn{i}_mean"] = 0.1 * jax.random.normal(km, (c,), jnp.float32)
        p[f"bn{i}_var"] = 1.0 + 0.5 * jax.nn.softplus(jax.random.normal(kv, (c,), jnp.float32))
    return p


# ------------------------------ pure-JAX reference ---------------------------

def _reference_forward(x_nchw, params, eps=1e-5):
    x = jnp.transpose(x_nchw, (0, 2, 3, 1))
    identity = x

    def bn(h, i):
        return ((h - params[f"bn{i}_mean"]) / jnp.sqrt(params[f"bn{i}_var"] + eps)
                * params[f"bn{i}_gamma"] + params[f"bn{i}_beta"])

    def conv(h, w_hwio, b, pad):
        y = jax.lax.conv_general_dilated(
            h, w_hwio, window_strides=(1, 1), padding=pad,
            dimension_numbers=("NHWC", "HWIO", "NHWC"))
        return y + b

    h = jax.nn.relu(bn(conv(x, params["conv1_w"][None, None], params["conv1_b"],
                            [(0, 0), (0, 0)]), 1))
    h = jax.nn.relu(bn(conv(h, params["conv2_w"], params["conv2_b"],
                            [(1, 1), (1, 1)]), 2))
    h = bn(conv(h, params["conv3_w"][None, None], params["conv3_b"],
                [(0, 0), (0, 0)]), 3)
    out = jax.nn.relu(h + identity)
    return jnp.transpose(out, (0, 3, 1, 2))


# ----------------------------------- main ------------------------------------

if __name__ == "__main__":
    # in_channels must equal out_channels * expansion for the identity add
    # (i_downsample=None, stride=1), matching how ResNet uses this block.
    out_channels = 8
    in_channels = out_channels * 4          # 32
    N, H, W = 2, 16, 16

    key = jax.random.PRNGKey(0)
    kx, kp = jax.random.split(key)
    x = jax.random.normal(kx, (N, in_channels, H, W), jnp.float32)   # NCHW input
    params = init_bottleneck_params(kp, in_channels, out_channels)

    ref = jax.block_until_ready(_reference_forward(x, params))

    # f32 compute path: tight check against the pure-JAX reference.
    out_f32 = jax.block_until_ready(
        bottleneck_forward(x, params, compute_dtype=jnp.float32))
    assert out_f32.shape == (N, out_channels * 4, H, W)
    assert jnp.allclose(out_f32, ref, atol=1e-4, rtol=1e-4)

    # bf16 MXU path (default fast path on v5e/v6e/v7x): relaxed tolerance.
    out_bf16 = jax.block_until_ready(bottleneck_forward(x, params))
    assert out_bf16.shape == (N, out_channels * 4, H, W)
    assert jnp.allclose(out_bf16, ref, atol=1e-1, rtol=1e-1)

    print("KERNEL_OK")
</pallas_src>

<mosaic_0001>
module attributes {stable_mosaic.version = 11 : i64} {
  func.func @_bottleneck_fused_kernel(%arg0: i32, %arg1: memref<1x16x16x32xf32, #tpu.memory_space<vmem>>, %arg2: memref<32x8xf32, #tpu.memory_space<vmem>>, %arg3: memref<1x8xf32, #tpu.memory_space<vmem>>, %arg4: memref<72x8xf32, #tpu.memory_space<vmem>>, %arg5: memref<1x8xf32, #tpu.memory_space<vmem>>, %arg6: memref<8x32xf32, #tpu.memory_space<vmem>>, %arg7: memref<1x32xf32, #tpu.memory_space<vmem>>, %arg8: memref<1x16x16x32xf32, #tpu.memory_space<vmem>>, %arg9: memref<256x72xf32, #tpu.memory_space<vmem>>) attributes {dimension_semantics = [#tpu.dimension_semantics<parallel>], iteration_bounds = array<i64: 2>, scalar_prefetch = 0 : i64, scratch_operands = 1 : i64, tpu.core_type = #tpu.core_type<tc>, window_params = [{transform_indices = @transform_0, window_bounds = array<i64: 1, 16, 16, 32>}, {pipeline_mode = #tpu.pipeline_mode<synchronous>, transform_indices = @transform_1, window_bounds = array<i64: 32, 8>}, {pipeline_mode = #tpu.pipeline_mode<synchronous>, transform_indices = @transform_2, window_bounds = array<i64: 1, 8>}, {pipeline_mode = #tpu.pipeline_mode<synchronous>, transform_indices = @transform_3, window_bounds = array<i64: 72, 8>}, {pipeline_mode = #tpu.pipeline_mode<synchronous>, transform_indices = @transform_4, window_bounds = array<i64: 1, 8>}, {pipeline_mode = #tpu.pipeline_mode<synchronous>, transform_indices = @transform_5, window_bounds = array<i64: 8, 32>}, {pipeline_mode = #tpu.pipeline_mode<synchronous>, transform_indices = @transform_6, window_bounds = array<i64: 1, 32>}, {transform_indices = @transform_7, window_bounds = array<i64: 1, 16, 16, 32>}]} {
    %c0 = arith.constant 0 : index
    %c0_0 = arith.constant 0 : index
    %c0_1 = arith.constant 0 : index
    %c0_2 = arith.constant 0 : index
    %0 = vector.load %arg1[%c0, %c0_0, %c0_1, %c0_2] : memref<1x16x16x32xf32, #tpu.memory_space<vmem>>, vector<1x16x16x32xf32>
    %1 = vector.shape_cast %0 : vector<1x16x16x32xf32> to vector<16x16x32xf32>
    %2 = vector.shape_cast %1 : vector<16x16x32xf32> to vector<256x32xf32>
    %c0_3 = arith.constant 0 : index
    %c0_4 = arith.constant 0 : index
    %3 = vector.load %arg2[%c0_3, %c0_4] : memref<32x8xf32, #tpu.memory_space<vmem>>, vector<32x8xf32>
    %cst = arith.constant dense<0.000000e+00> : vector<256x8xf32>
    %4 = tpu.matmul %2, %3, %cst {dimension_numbers = #tpu.dot_dimension_numbers<[1], [0], [0], [1], [0, 0, 1, 1], [], []>} : vector<256x32xf32>, vector<32x8xf32>, vector<256x8xf32> -> vector<256x8xf32>
    %c0_5 = arith.constant 0 : index
    %c0_6 = arith.constant 0 : index
    %5 = vector.load %arg3[%c0_5, %c0_6] : memref<1x8xf32, #tpu.memory_space<vmem>>, vector<1x8xf32>
    %6 = vector.broadcast %5 : vector<1x8xf32> to vector<256x8xf32>
    %7 = arith.addf %4, %6 : vector<256x8xf32>
    %cst_7 = arith.constant 0.000000e+00 : f32
    %8 = vector.broadcast %cst_7 : f32 to vector<256x8xf32>
    %9 = arith.maximumf %7, %8 : vector<256x8xf32>
    %10 = tpu.iota {dimensions = array<i32: 0>} : vector<16x16x8xi32>
    %11 = vector.shape_cast %10 : vector<16x16x8xi32> to vector<256x8xi32>
    %12 = tpu.iota {dimensions = array<i32: 1>} : vector<16x16x8xi32>
    %13 = vector.shape_cast %12 : vector<16x16x8xi32> to vector<256x8xi32>
    %c1_i32 = arith.constant 1 : i32
    %14 = vector.broadcast %c1_i32 : i32 to vector<256x8xi32>
    %15 = arith.cmpi sge, %11, %14 : vector<256x8xi32>
    %c1_i32_8 = arith.constant 1 : i32
    %16 = vector.broadcast %c1_i32_8 : i32 to vector<256x8xi32>
    %17 = arith.cmpi sge, %13, %16 : vector<256x8xi32>
    %18 = arith.andi %15, %17 : vector<256x8xi1>
    %c17_i32 = arith.constant 17 : i32
    %19 = tpu.dynamic_rotate %9 by %c17_i32 dim 0 : vector<256x8xf32>, i32 -> vector<256x8xf32>
    %cst_9 = arith.constant 0.000000e+00 : f32
    %20 = vector.broadcast %cst_9 : f32 to vector<256x8xf32>
    %21 = arith.select %18, %19, %20 : vector<256x8xi1>, vector<256x8xf32>
    %c0_10 = arith.constant 0 : index
    %c0_11 = arith.constant 0 : index
    %22 = vector.load %arg9[%c0_10, %c0_11] : memref<256x72xf32, #tpu.memory_space<vmem>>, vector<256x8xf32>
    tpu.vector_store %arg9[%c0_10, %c0_11], %21 {strides = array<i32>} : memref<256x72xf32, #tpu.memory_space<vmem>>, vector<256x8xf32>,
    %c16_i32 = arith.constant 16 : i32
    %23 = tpu.dynamic_rotate %9 by %c16_i32 dim 0 : vector<256x8xf32>, i32 -> vector<256x8xf32>
    %cst_12 = arith.constant 0.000000e+00 : f32
    %24 = vector.broadcast %cst_12 : f32 to vector<256x8xf32>
    %25 = arith.select %15, %23, %24 : vector<256x8xi1>, vector<256x8xf32>
    %c0_13 = arith.constant 0 : index
    %c8 = arith.constant 8 : index
    %26 = vector.load %arg9[%c0_13, %c8] : memref<256x72xf32, #tpu.memory_space<vmem>>, vector<256x8xf32>
    tpu.vector_store %arg9[%c0_13, %c8], %25 {strides = array<i32>} : memref<256x72xf32, #tpu.memory_space<vmem>>, vector<256x8xf32>,
    %c14_i32 = arith.constant 14 : i32
    %27 = vector.broadcast %c14_i32 : i32 to vector<256x8xi32>
    %28 = arith.cmpi sle, %13, %27 : vector<256x8xi32>
    %29 = arith.andi %15, %28 : vector<256x8xi1>
    %c15_i32 = arith.constant 15 : i32
    %30 = tpu.dynamic_rotate %9 by %c15_i32 dim 0 : vector<256x8xf32>, i32 -> vector<256x8xf32>
    %cst_14 = arith.constant 0.000000e+00 : f32
    %31 = vector.broadcast %cst_14 : f32 to vector<256x8xf32>
    %32 = arith.select %29, %30, %31 : vector<256x8xi1>, vector<256x8xf32>
    %c0_15 = arith.constant 0 : index
    %c16 = arith.constant 16 : index
    %33 = vector.load %arg9[%c0_15, %c16] : memref<256x72xf32, #tpu.memory_space<vmem>>, vector<256x8xf32>
    tpu.vector_store %arg9[%c0_15, %c16], %32 {strides = array<i32>} : memref<256x72xf32, #tpu.memory_space<vmem>>, vector<256x8xf32>,
    %c1_i32_16 = arith.constant 1 : i32
    %34 = vector.broadcast %c1_i32_16 : i32 to vector<256x8xi32>
    %35 = arith.cmpi sge, %13, %34 : vector<256x8xi32>
    %c1_i32_17 = arith.constant 1 : i32
    %36 = tpu.dynamic_rotate %9 by %c1_i32_17 dim 0 : vector<256x8xf32>, i32 -> vector<256x8xf32>
    %cst_18 = arith.constant 0.000000e+00 : f32
    %37 = vector.broadcast %cst_18 : f32 to vector<256x8xf32>
    %38 = arith.select %35, %36, %37 : vector<256x8xi1>, vector<256x8xf32>
    %c0_19 = arith.constant 0 : index
    %c24 = arith.constant 24 : index
    %39 = vector.load %arg9[%c0_19, %c24] : memref<256x72xf32, #tpu.memory_space<vmem>>, vector<256x8xf32>
    tpu.vector_store %arg9[%c0_19, %c24], %38 {strides = array<i32>} : memref<256x72xf32, #tpu.memory_space<vmem>>, vector<256x8xf32>,
    %c0_20 = arith.constant 0 : index
    %c32 = arith.constant 32 : index
    %40 = vector.load %arg9[%c0_20, %c32] : memref<256x72xf32, #tpu.memory_space<vmem>>, vector<256x8xf32>
    tpu.vector_store %arg9[%c0_20, %c32], %9 {strides = array<i32>} : memref<256x72xf32, #tpu.memory_space<vmem>>, vector<256x8xf32>,
    %c14_i32_21 = arith.constant 14 : i32
    %41 = vector.broadcast %c14_i32_21 : i32 to vector<256x8xi32>
    %42 = arith.cmpi sle, %13, %41 : vector<256x8xi32>
    %c255_i32 = arith.constant 255 : i32
    %43 = tpu.dynamic_rotate %9 by %c255_i32 dim 0 : vector<256x8xf32>, i32 -> vector<256x8xf32>
    %cst_22 = arith.constant 0.000000e+00 : f32
    %44 = vector.broadcast %cst_22 : f32 to vector<256x8xf32>
    %45 = arith.select %42, %43, %44 : vector<256x8xi1>, vector<256x8xf32>
    %c0_23 = arith.constant 0 : index
    %c40 = arith.constant 40 : index
    %46 = vector.load %arg9[%c0_23, %c40] : memref<256x72xf32, #tpu.memory_space<vmem>>, vector<256x8xf32>
    tpu.vector_store %arg9[%c0_23, %c40], %45 {strides = array<i32>} : memref<256x72xf32, #tpu.memory_space<vmem>>, vector<256x8xf32>,
    %c14_i32_24 = arith.constant 14 : i32
    %47 = vector.broadcast %c14_i32_24 : i32 to vector<256x8xi32>
    %48 = arith.cmpi sle, %11, %47 : vector<256x8xi32>
    %c1_i32_25 = arith.constant 1 : i32
    %49 = vector.broadcast %c1_i32_25 : i32 to vector<256x8xi32>
    %50 = arith.cmpi sge, %13, %49 : vector<256x8xi32>
    %51 = arith.andi %48, %50 : vector<256x8xi1>
    %c241_i32 = arith.constant 241 : i32
    %52 = tpu.dynamic_rotate %9 by %c241_i32 dim 0 : vector<256x8xf32>, i32 -> vector<256x8xf32>
    %cst_26 = arith.constant 0.000000e+00 : f32
    %53 = vector.broadcast %cst_26 : f32 to vector<256x8xf32>
    %54 = arith.select %51, %52, %53 : vector<256x8xi1>, vector<256x8xf32>
    %c0_27 = arith.constant 0 : index
    %c48 = arith.constant 48 : index
    %55 = vector.load %arg9[%c0_27, %c48] : memref<256x72xf32, #tpu.memory_space<vmem>>, vector<256x8xf32>
    tpu.vector_store %arg9[%c0_27, %c48], %54 {strides = array<i32>} : memref<256x72xf32, #tpu.memory_space<vmem>>, vector<256x8xf32>,
    %c240_i32 = arith.constant 240 : i32
    %56 = tpu.dynamic_rotate %9 by %c240_i32 dim 0 : vector<256x8xf32>, i32 -> vector<256x8xf32>
    %cst_28 = arith.constant 0.000000e+00 : f32
    %57 = vector.broadcast %cst_28 : f32 to vector<256x8xf32>
    %58 = arith.select %48, %56, %57 : vector<256x8xi1>, vector<256x8xf32>
    %c0_29 = arith.constant 0 : index
    %c56 = arith.constant 56 : index
    %59 = vector.load %arg9[%c0_29, %c56] : memref<256x72xf32, #tpu.memory_space<vmem>>, vector<256x8xf32>
    tpu.vector_store %arg9[%c0_29, %c56], %58 {strides = array<i32>} : memref<256x72xf32, #tpu.memory_space<vmem>>, vector<256x8xf32>,
    %c14_i32_30 = arith.constant 14 : i32
    %60 = vector.broadcast %c14_i32_30 : i32 to vector<256x8xi32>
    %61 = arith.cmpi sle, %13, %60 : vector<256x8xi32>
    %62 = arith.andi %48, %61 : vector<256x8xi1>
    %c239_i32 = arith.constant 239 : i32
    %63 = tpu.dynamic_rotate %9 by %c239_i32 dim 0 : vector<256x8xf32>, i32 -> vector<256x8xf32>
    %cst_31 = arith.constant 0.000000e+00 : f32
    %64 = vector.broadcast %cst_31 : f32 to vector<256x8xf32>
    %65 = arith.select %62, %63, %64 : vector<256x8xi1>, vector<256x8xf32>
    %c0_32 = arith.constant 0 : index
    %c64 = arith.constant 64 : index
    %66 = vector.load %arg9[%c0_32, %c64] : memref<256x72xf32, #tpu.memory_space<vmem>>, vector<256x8xf32>
    tpu.vector_store %arg9[%c0_32, %c64], %65 {strides = array<i32>} : memref<256x72xf32, #tpu.memory_space<vmem>>, vector<256x8xf32>,
    %c0_33 = arith.constant 0 : index
    %c0_34 = arith.constant 0 : index
    %67 = vector.load %arg9[%c0_33, %c0_34] : memref<256x72xf32, #tpu.memory_space<vmem>>, vector<256x72xf32>
    %c0_35 = arith.constant 0 : index
    %c0_36 = arith.constant 0 : index
    %68 = vector.load %arg4[%c0_35, %c0_36] : memref<72x8xf32, #tpu.memory_space<vmem>>, vector<72x8xf32>
    %cst_37 = arith.constant dense<0.000000e+00> : vector<256x8xf32>
    %69 = tpu.matmul %67, %68, %cst_37 {dimension_numbers = #tpu.dot_dimension_numbers<[1], [0], [0], [1], [0, 0, 1, 1], [], []>} : vector<256x72xf32>, vector<72x8xf32>, vector<256x8xf32> -> vector<256x8xf32>
    %c0_38 = arith.constant 0 : index
    %c0_39 = arith.constant 0 : index
    %70 = vector.load %arg5[%c0_38, %c0_39] : memref<1x8xf32, #tpu.memory_space<vmem>>, vector<1x8xf32>
    %71 = vector.broadcast %70 : vector<1x8xf32> to vector<256x8xf32>
    %72 = arith.addf %69, %71 : vector<256x8xf32>
    %cst_40 = arith.constant 0.000000e+00 : f32
    %73 = vector.broadcast %cst_40 : f32 to vector<256x8xf32>
    %74 = arith.maximumf %72, %73 : vector<256x8xf32>
    %c0_41 = arith.constant 0 : index
    %c0_42 = arith.constant 0 : index
    %75 = vector.load %arg6[%c0_41, %c0_42] : memref<8x32xf32, #tpu.memory_space<vmem>>, vector<8x32xf32>
    %cst_43 = arith.constant dense<0.000000e+00> : vector<256x32xf32>
    %76 = tpu.matmul %74, %75, %cst_43 {dimension_numbers = #tpu.dot_dimension_numbers<[1], [0], [0], [1], [0, 0, 1, 1], [], []>} : vector<256x8xf32>, vector<8x32xf32>, vector<256x32xf32> -> vector<256x32xf32>
    %c0_44 = arith.constant 0 : index
    %c0_45 = arith.constant 0 : index
    %77 = vector.load %arg7[%c0_44, %c0_45] : memref<1x32xf32, #tpu.memory_space<vmem>>, vector<1x32xf32>
    %78 = vector.broadcast %77 : vector<1x32xf32> to vector<256x32xf32>
    %79 = arith.addf %76, %78 : vector<256x32xf32>
    %c0_46 = arith.constant 0 : index
    %c0_47 = arith.constant 0 : index
    %c0_48 = arith.constant 0 : index
    %c0_49 = arith.constant 0 : index
    %80 = vector.load %arg1[%c0_46, %c0_47, %c0_48, %c0_49] : memref<1x16x16x32xf32, #tpu.memory_space<vmem>>, vector<1x16x16x32xf32>
    %81 = vector.shape_cast %80 : vector<1x16x16x32xf32> to vector<16x16x32xf32>
    %82 = vector.shape_cast %81 : vector<16x16x32xf32> to vector<256x32xf32>
    %83 = arith.addf %79, %82 : vector<256x32xf32>
    %cst_50 = arith.constant 0.000000e+00 : f32
    %84 = vector.broadcast %cst_50 : f32 to vector<256x32xf32>
    %85 = arith.maximumf %83, %84 : vector<256x32xf32>
    %86 = vector.shape_cast %85 : vector<256x32xf32> to vector<16x16x32xf32>
    %c0_51 = arith.constant 0 : index
    %c0_52 = arith.constant 0 : index
    %c0_53 = arith.constant 0 : index
    %c0_54 = arith.constant 0 : index
    %87 = vector.load %arg8[%c0_51, %c0_52, %c0_53, %c0_54] : memref<1x16x16x32xf32, #tpu.memory_space<vmem>>, vector<1x16x16x32xf32>
    %88 = vector.shape_cast %87 : vector<1x16x16x32xf32> to vector<16x16x32xf32>
    %89 = vector.shape_cast %86 : vector<16x16x32xf32> to vector<1x16x16x32xf32>
    tpu.vector_store %arg8[%c0_51, %c0_52, %c0_53, %c0_54], %89 {strides = array<i32>} : memref<1x16x16x32xf32, #tpu.memory_space<vmem>>, vector<1x16x16x32xf32>,
    return
  }
  func.func @transform_0(%arg0: i32) -> (i32, i32, i32, i32) {
    %c0_i32 = arith.constant 0 : i32
    %c0_i32_0 = arith.constant 0 : i32
    %c0_i32_1 = arith.constant 0 : i32
    %c0_i32_2 = arith.constant 0 : i32
    return %arg0, %c0_i32, %c0_i32_0, %c0_i32_1 : i32, i32, i32, i32
  }
  func.func @transform_1(%arg0: i32) -> (i32, i32) {
    %c0_i32 = arith.constant 0 : i32
    %c0_i32_0 = arith.constant 0 : i32
    %c0_i32_1 = arith.constant 0 : i32
    return %c0_i32, %c0_i32_0 : i32, i32
  }
  func.func @transform_2(%arg0: i32) -> (i32, i32) {
    %c0_i32 = arith.constant 0 : i32
    %c0_i32_0 = arith.constant 0 : i32
    %c0_i32_1 = arith.constant 0 : i32
    return %c0_i32, %c0_i32_0 : i32, i32
  }
  func.func @transform_3(%arg0: i32) -> (i32, i32) {
    %c0_i32 = arith.constant 0 : i32
    %c0_i32_0 = arith.constant 0 : i32
    %c0_i32_1 = arith.constant 0 : i32
    return %c0_i32, %c0_i32_0 : i32, i32
  }
  func.func @transform_4(%arg0: i32) -> (i32, i32) {
    %c0_i32 = arith.constant 0 : i32
    %c0_i32_0 = arith.constant 0 : i32
    %c0_i32_1 = arith.constant 0 : i32
    return %c0_i32, %c0_i32_0 : i32, i32
  }
  func.func @transform_5(%arg0: i32) -> (i32, i32) {
    %c0_i32 = arith.constant 0 : i32
    %c0_i32_0 = arith.constant 0 : i32
    %c0_i32_1 = arith.constant 0 : i32
    return %c0_i32, %c0_i32_0 : i32, i32
  }
  func.func @transform_6(%arg0: i32) -> (i32, i32) {
    %c0_i32 = arith.constant 0 : i32
    %c0_i32_0 = arith.constant 0 : i32
    %c0_i32_1 = arith.constant 0 : i32
    return %c0_i32, %c0_i32_0 : i32, i32
  }
  func.func @transform_7(%arg0: i32) -> (i32, i32, i32, i32) {
    %c0_i32 = arith.constant 0 : i32
    %c0_i32_0 = arith.constant 0 : i32
    %c0_i32_1 = arith.constant 0 : i32
    %c0_i32_2 = arith.constant 0 : i32
    return %arg0, %c0_i32, %c0_i32_0, %c0_i32_1 : i32, i32, i32, i32
  }
}

</mosaic_0001>

<llo_original>
// kernel: tpu_custom_call.1
$region0: #{tpu_custom_call.1}
  #allocation0 [shape = 'u32[]', space=smem, size = 0x4, offset = 0x4, fixed_abs, tag = 'smem constant byte address 0x4 - core index']
  #allocation1 [shape = 'u32[144,128]{1,0:T(1,128)}', space=vmem, size = 0x12000, scoped, tag = 'internal scratch']
  #allocation2 [shape = 'f32[256,72]{1,0:T(8,128)}', space=vmem, size = 0x20000, scoped, tag = 'scratch operand']
  %s0 = inlined_call_operand.hbm [shape: f32[2,16,16,32], index: 0, kind: input, shape index: {}]
  %s1 = inlined_call_operand.vmem [shape: f32[32,8], index: 1, kind: input, shape index: {}]
  %s2 = inlined_call_operand.vmem [shape: f32[1,8], index: 2, kind: input, shape index: {}]
  %s3 = inlined_call_operand.vmem [shape: f32[72,8], index: 3, kind: input, shape index: {}]
  %s4 = inlined_call_operand.vmem [shape: f32[1,8], index: 4, kind: input, shape index: {}]
  %s5 = inlined_call_operand.vmem [shape: f32[8,32], index: 5, kind: input, shape index: {}]
  %s6 = inlined_call_operand.vmem [shape: f32[1,32], index: 6, kind: input, shape index: {}]
  %s7 = inlined_call_operand.hbm [shape: f32[2,16,16,32], index: 7, kind: output, shape index: {}]
  %s8 = sld [smem:[#allocation0]]
  $region65: #{tpu_custom_call.1} parent=0
    _
  %s10 = ssub.s32 1, %s8
  %s11 = scalar_select 0, %s10, %s8
  $region1: #{tpu_custom_call.1} parent=0
    #allocation3 [shape = 'u8[262144]{0}', space=vmem, size = 0x40000, scoped, tag = 'input window, operand 0']
    #allocation4 [shape = 's32[2]{0}', space=sflag, size = 0x8, scoped, tag = 'scoped memory for tpu_custom_call.1']
    #allocation5 [shape = 's32[2]{0}', space=sflag, size = 0x8, scoped, tag = 'scoped memory for tpu_custom_call.1']
    #allocation6 [shape = 'u8[262144]{0}', space=vmem, size = 0x40000, scoped, tag = 'output window, operand 0']
    %12 = vsyncpa [#allocation4], 0
    %s13 = scalar_lea.sflag [#allocation4], 1
    %14 = vsyncpa %s13, 0
    %15 = vsyncpa [#allocation5], 0
    %s16 = scalar_lea.sflag [#allocation5], 1
    %17 = vsyncpa %s16, 0
    loop: start=0, step=1, limit=4
    $region2: #{tpu_custom_call.1} parent=1 // loop_pre_header
      _
    $region3: #{tpu_custom_call.1} parent=1 // loop_header
      %s19 = sphi 0, %s23
      %p20 = scmp.ge.s32.totalorder %s19, 4
      %s29 = sphi 0, %s31
      %s32 = sphi 0, %s29
      %s33 = sphi 0, %s32
      %s49 = sphi 0, %s33
      %s53 = sphi 0, %s53
      %s55 = sphi 0, %s53
      %s56 = sphi 0, %s55
      %s70 = sphi 0, %s56
      %s74 = sphi 0, %s74
      %s76 = sphi 0, %s74
      %s77 = sphi 0, %s76
      %s91 = sphi 0, %s77
      %s95 = sphi 0, %s95
      %s97 = sphi 0, %s95
      %s98 = sphi 0, %s97
      %s112 = sphi 0, %s98
      %s116 = sphi 0, %s116
      %s118 = sphi 0, %s116
      %s119 = sphi 0, %s118
      %s133 = sphi 0, %s119
      %s137 = sphi 0, %s137
      %s139 = sphi 0, %s137
      %s140 = sphi 0, %s139
      %s154 = sphi 0, %s140
      %s158 = sphi 0, %s158
      %s160 = sphi 0, %s158
      %s161 = sphi 0, %s160
      %s175 = sphi 0, %s161
      %s181 = sphi 0, %s183
      %s184 = sphi 0, %s181
      %s185 = sphi 0, %s184
      %s201 = sphi 0, %s185
    $region4: #{tpu_custom_call.1} parent=1 // loop_header_branch
      %22 = sbr.rel (%p20) target = $region8
    $region5: #{tpu_custom_call.1} parent=1 // loop_body
      %s24 = ssub.s32 %s19, 1
      %s25 = ssub.s32 %s19, 2
      %s26 = sadd.s32 %s19, 1
      %s27 = ssub.s32 %s19, %s26
      %p28 = scmp.eq.s32.totalorder %s27, 0
      %s30 = sadd.s32 %s29, 1
      %s31 = scalar_select %p28, %s29, %s30
      %p34 = pneg %p28
      %p35 = scmp.eq.s32.totalorder %s19, 1
      %p36 = por %p34, %p35
      %p37 = scmp.ne.s32.totalorder %s29, %s32
      %p38 = scmp.eq.s32.totalorder %s19, 0
      %p39 = por %p37, %p38
      %p40 = scmp.ne.s32.totalorder %s29, %s32
      %p41 = scmp.eq.s32.totalorder %s24, 1
      %p42 = por %p40, %p41
      %p43 = scmp.ne.s32.totalorder %s32, %s33
      %p44 = scmp.eq.s32.totalorder %s24, 0
      %p45 = por %p43, %p44
      %p46 = scmp.ne.s32.totalorder %s32, %s33
      %p47 = scmp.eq.s32.totalorder %s25, 1
      %p48 = por %p46, %p47
      %p50 = scmp.ne.s32.totalorder %s33, %s49
      %p51 = scmp.eq.s32.totalorder %s25, 0
      %p52 = por %p50, %p51
      %s54 = sadd.s32 %s53, 1
      %p57 = scmp.eq.s32.totalorder %s19, 1
      %p58 = scmp.ne.s32.totalorder %s53, %s55
      %p59 = scmp.eq.s32.totalorder %s19, 0
      %p60 = por %p58, %p59
      %p61 = scmp.ne.s32.totalorder %s53, %s55
      %p62 = scmp.eq.s32.totalorder %s24, 1
      %p63 = por %p61, %p62
      %p64 = scmp.ne.s32.totalorder %s55, %s56
      %p65 = scmp.eq.s32.totalorder %s24, 0
      %p66 = por %p64, %p65
      %p67 = scmp.ne.s32.totalorder %s55, %s56
      %p68 = scmp.eq.s32.totalorder %s25, 1
      %p69 = por %p67, %p68
      %p71 = scmp.ne.s32.totalorder %s56, %s70
      %p72 = scmp.eq.s32.totalorder %s25, 0
      %p73 = por %p71, %p72
      %s75 = sadd.s32 %s74, 1
      %p78 = scmp.eq.s32.totalorder %s19, 1
      %p79 = scmp.ne.s32.totalorder %s74, %s76
      %p80 = scmp.eq.s32.totalorder %s19, 0
      %p81 = por %p79, %p80
      %p82 = scmp.ne.s32.totalorder %s74, %s76
      %p83 = scmp.eq.s32.totalorder %s24, 1
      %p84 = por %p82, %p83
      %p85 = scmp.ne.s32.totalorder %s76, %s77
      %p86 = scmp.eq.s32.totalorder %s24, 0
      %p87 = por %p85, %p86
      %p88 = scmp.ne.s32.totalorder %s76, %s77
      %p89 = scmp.eq.s32.totalorder %s25, 1
      %p90 = por %p88, %p89
      %p92 = scmp.ne.s32.totalorder %s77, %s91
      %p93 = scmp.eq.s32.totalorder %s25, 0
      %p94 = por %p92, %p93
      %s96 = sadd.s32 %s95, 1
      %p99 = scmp.eq.s32.totalorder %s19, 1
      %p100 = scmp.ne.s32.totalorder %s95, %s97
      %p101 = scmp.eq.s32.totalorder %s19, 0
      %p102 = por %p100, %p101
      %p103 = scmp.ne.s32.totalorder %s95, %s97
      %p104 = scmp.eq.s32.totalorder %s24, 1
      %p105 = por %p103, %p104
      %p106 = scmp.ne.s32.totalorder %s97, %s98
      %p107 = scmp.eq.s32.totalorder %s24, 0
      %p108 = por %p106, %p107
      %p109 = scmp.ne.s32.totalorder %s97, %s98
      %p110 = scmp.eq.s32.totalorder %s25, 1
      %p111 = por %p109, %p110
      %p113 = scmp.ne.s32.totalorder %s98, %s112
      %p114 = scmp.eq.s32.totalorder %s25, 0
      %p115 = por %p113, %p114
      %s117 = sadd.s32 %s116, 1
      %p120 = scmp.eq.s32.totalorder %s19, 1
      %p121 = scmp.ne.s32.totalorder %s116, %s118
      %p122 = scmp.eq.s32.totalorder %s19, 0
      %p123 = por %p121, %p122
      %p124 = scmp.ne.s32.totalorder %s116, %s118
      %p125 = scmp.eq.s32.totalorder %s24, 1
      %p126 = por %p124, %p125
      %p127 = scmp.ne.s32.totalorder %s118, %s119
      %p128 = scmp.eq.s32.totalorder %s24, 0
      %p129 = por %p127, %p128
      %p130 = scmp.ne.s32.totalorder %s118, %s119
      %p131 = scmp.eq.s32.totalorder %s25, 1
      %p132 = por %p130, %p131
      %p134 = scmp.ne.s32.totalorder %s119, %s133
      %p135 = scmp.eq.s32.totalorder %s25, 0
      %p136 = por %p134, %p135
      %s138 = sadd.s32 %s137, 1
      %p141 = scmp.eq.s32.totalorder %s19, 1
      %p142 = scmp.ne.s32.totalorder %s137, %s139
      %p143 = scmp.eq.s32.totalorder %s19, 0
      %p144 = por %p142, %p143
      %p145 = scmp.ne.s32.totalorder %s137, %s139
      %p146 = scmp.eq.s32.totalorder %s24, 1
      %p147 = por %p145, %p146
      %p148 = scmp.ne.s32.totalorder %s139, %s140
      %p149 = scmp.eq.s32.totalorder %s24, 0
      %p150 = por %p148, %p149
      %p151 = scmp.ne.s32.totalorder %s139, %s140
      %p152 = scmp.eq.s32.totalorder %s25, 1
      %p153 = por %p151, %p152
      %p155 = scmp.ne.s32.totalorder %s140, %s154
      %p156 = scmp.eq.s32.totalorder %s25, 0
      %p157 = por %p155, %p156
      %s159 = sadd.s32 %s158, 1
      %p162 = scmp.eq.s32.totalorder %s19, 1
      %p163 = scmp.ne.s32.totalorder %s158, %s160
      %p164 = scmp.eq.s32.totalorder %s19, 0
      %p165 = por %p163, %p164
      %p166 = scmp.ne.s32.totalorder %s158, %s160
      %p167 = scmp.eq.s32.totalorder %s24, 1
      %p168 = por %p166, %p167
      %p169 = scmp.ne.s32.totalorder %s160, %s161
      %p170 = scmp.eq.s32.totalorder %s24, 0
      %p171 = por %p169, %p170
      %p172 = scmp.ne.s32.totalorder %s160, %s161
      %p173 = scmp.eq.s32.totalorder %s25, 1
      %p174 = por %p172, %p173
      %p176 = scmp.ne.s32.totalorder %s161, %s175
      %p177 = scmp.eq.s32.totalorder %s25, 0
      %p178 = por %p176, %p177
      %s179 = ssub.s32 %s19, %s26
      %p180 = scmp.eq.s32.totalorder %s179, 0
      %s182 = sadd.s32 %s181, 1
      %s183 = scalar_select %p180, %s181, %s182
      %p186 = pneg %p180
      %p187 = scmp.eq.s32.totalorder %s19, 1
      %p188 = por %p186, %p187
      %p189 = scmp.ne.s32.totalorder %s181, %s184
      %p190 = scmp.eq.s32.totalorder %s19, 0
      %p191 = por %p189, %p190
      %p192 = scmp.ne.s32.totalorder %s181, %s184
      %p193 = scmp.eq.s32.totalorder %s24, 1
      %p194 = por %p192, %p193
      %p195 = scmp.ne.s32.totalorder %s184, %s185
      %p196 = scmp.eq.s32.totalorder %s24, 0
      %p197 = por %p195, %p196
      %p198 = scmp.ne.s32.totalorder %s184, %s185
      %p199 = scmp.eq.s32.totalorder %s25, 1
      %p200 = por %p198, %p199
      %p202 = scmp.ne.s32.totalorder %s185, %s201
      %p203 = scmp.eq.s32.totalorder %s25, 0
      %p204 = por %p202, %p203
      %p205 = scmp.le.s32.totalorder 1, %s19
      %p206 = scmp.lt.s32.totalorder %s19, 3
      %p207 = pnand %p205, %p206
      %p208 = pneg %p207
      // Predicated region
      $region9: #{tpu_custom_call.1} parent=5 // pred_check
        _
      $region10: #{tpu_custom_call.1} parent=5 // pred_check_branch
        %210 = sbr.rel (%p207) target = $region12
      $region11: #{tpu_custom_call.1} parent=5 // pred_region
        %s211 = ssub.s32 %s19, 1
        // Predicated region
        $region13: #{tpu_custom_call.1} parent=11 // pred_check
          %p212 = pneg %p66
        $region14: #{tpu_custom_call.1} parent=11 // pred_check_branch
          %214 = sbr.rel (%p212) target = $region16
        $region15: #{tpu_custom_call.1} parent=11 // pred_region
          _
        $region16: #{tpu_custom_call.1} parent=11 // pred_fallthru
          _
        // Predicated region
        $region17: #{tpu_custom_call.1} parent=11 // pred_check
          %p215 = pneg %p87
        $region18: #{tpu_custom_call.1} parent=11 // pred_check_branch
          %217 = sbr.rel (%p215) target = $region20
        $region19: #{tpu_custom_call.1} parent=11 // pred_region
          _
        $region20: #{tpu_custom_call.1} parent=11 // pred_fallthru
          _
        // Predicated region
        $region21: #{tpu_custom_call.1} parent=11 // pred_check
          %p218 = pneg %p108
        $region22: #{tpu_custom_call.1} parent=11 // pred_check_branch
          %220 = sbr.rel (%p218) target = $region24
        $region23: #{tpu_custom_call.1} parent=11 // pred_region
          _
        $region24: #{tpu_custom_call.1} parent=11 // pred_fallthru
          _
        // Predicated region
        $region25: #{tpu_custom_call.1} parent=11 // pred_check
          %p221 = pneg %p129
        $region26: #{tpu_custom_call.1} parent=11 // pred_check_branch
          %223 = sbr.rel (%p221) target = $region28
        $region27: #{tpu_custom_call.1} parent=11 // pred_region
          _
        $region28: #{tpu_custom_call.1} parent=11 // pred_fallthru
          _
        // Predicated region
        $region29: #{tpu_custom_call.1} parent=11 // pred_check
          %p224 = pneg %p150
        $region30: #{tpu_custom_call.1} parent=11 // pred_check_branch
          %226 = sbr.rel (%p224) target = $region32
        $region31: #{tpu_custom_call.1} parent=11 // pred_region
          _
        $region32: #{tpu_custom_call.1} parent=11 // pred_fallthru
          _
        // Predicated region
        $region33: #{tpu_custom_call.1} parent=11 // pred_check
          %p227 = pneg %p171
        $region34: #{tpu_custom_call.1} parent=11 // pred_check_branch
          %229 = sbr.rel (%p227) target = $region36
        $region35: #{tpu_custom_call.1} parent=11 // pred_region
          _
        $region36: #{tpu_custom_call.1} parent=11 // pred_fallthru
          _
      $region12: #{tpu_custom_call.1} parent=5 // pred_fallthru
        _
      %p230 = scmp.lt.s32.totalorder %s19, 2
      // Predicated region
      $region37: #{tpu_custom_call.1} parent=5 // pred_check
        %p231 = pneg %p230
      $region38: #{tpu_custom_call.1} parent=5 // pred_check_branch
        %233 = sbr.rel (%p231) target = $region40
      $region39: #{tpu_custom_call.1} parent=5 // pred_region
        // Predicated region
        $region41: #{tpu_custom_call.1} parent=39 // pred_check
          %p234 = pneg %p39
        $region42: #{tpu_custom_call.1} parent=39 // pred_check_branch
          %236 = sbr.rel (%p234) target = $region44
        $region43: #{tpu_custom_call.1} parent=39 // pred_region
          %s237 = sand.u32 %s29, 1
          %s238 = scalar_lea.sflag [#allocation4], %s237
          %s239 = sand.u32 %s29, 1
          %s240 = smul.addr %s239, 256
          %s241 = scalar_lea.vmem [#allocation3], %s240
          %s243 = ssub.s32 4096, 4096
          %244 = vsyncadd %s238, %s243
          %s245 = smul.addr %s19, 32
          %s246 = smul.addr %s245, 128
          %s247 = scalar_lea.hbm %s0, %s246
          %s248 = sshll.u32 %s241, 4
          %s249 = int_to_ptr.vmem [resolvable:$true] %s248
          %254 = dma.hbm_to_vmem [thread:$0]  %s247, 4096, %s249, %s238, 128, 128, 8
        $region44: #{tpu_custom_call.1} parent=39 // pred_fallthru
          _
      $region40: #{tpu_custom_call.1} parent=5 // pred_fallthru
        _
      %p255 = scmp.le.s32.totalorder 1, %s19
      %p256 = scmp.lt.s32.totalorder %s19, 3
      %p257 = pnand %p255, %p256
      %p258 = pneg %p257
      // Predicated region
      $region45: #{tpu_custom_call.1} parent=5 // pred_check
        _
      $region46: #{tpu_custom_call.1} parent=5 // pred_check_branch
        %260 = sbr.rel (%p257) target = $region48
      $region47: #{tpu_custom_call.1} parent=5 // pred_region
        %s261 = ssub.s32 %s19, 1
        %s262 = sand.u32 %s32, 1
        %s263 = scalar_lea.sflag [#allocation4], %s262
        %s264 = sand.u32 %s32, 1
        %s265 = smul.addr %s264, 256
        %s266 = scalar_lea.vmem [#allocation3], %s265
        // Predicated region
        $region49: #{tpu_custom_call.1} parent=47 // pred_check
          %p267 = pneg %p45
        $region50: #{tpu_custom_call.1} parent=47 // pred_check_branch
          %269 = sbr.rel (%p267) target = $region52
        $region51: #{tpu_custom_call.1} parent=47 // pred_region
          %270 = dma.done %s263, 4096
        $region52: #{tpu_custom_call.1} parent=47 // pred_fallthru
          _
        %s271 = sand.u32 %s32, 1
        %s272 = scalar_lea.sflag [#allocation4], %s271
        %s273 = sand.u32 %s32, 1
        %s274 = smul.addr %s273, 256
        %s275 = scalar_lea.vmem [#allocation3], %s274
        %p276 = pneg %p45
        %p277 = pneg %p42
        %p278 = pneg %p66
        %p279 = pneg %p63
        %p280 = pneg %p87
        %p281 = pneg %p84
        %p282 = pneg %p108
        %p283 = pneg %p105
        %p284 = pneg %p129
        %p285 = pneg %p126
        %p286 = pneg %p150
        %p287 = pneg %p147
        %p288 = pneg %p171
        %p289 = pneg %p168
        %p290 = pneg %p197
        %p291 = pneg %p194
        %s292 = sand.u32 %s184, 1
        %s293 = scalar_lea.sflag [#allocation5], %s292
        %s294 = sand.u32 %s184, 1
        %s295 = smul.addr %s294, 256
        %s296 = scalar_lea.vmem [#allocation6], %s295
        %v297 = vld [vmem:[%s266] sm:$0xff]
        %v298 = vld [vmem:[%s266 + $0x8] sm:$0xff]
        %v299 = vld [vmem:[%s266 + $0x10] sm:$0xff]
        %v300 = vld [vmem:[%s266 + $0x18] sm:$0xff]
        %v301 = vld [vmem:[%s266 + $0x20] sm:$0xff]
        %v302 = vld [vmem:[%s266 + $0x28] sm:$0xff]
        %v303 = vld [vmem:[%s266 + $0x30] sm:$0xff]
        %v304 = vld [vmem:[%s266 + $0x38] sm:$0xff]
        %v305 = vld [vmem:[%s266 + $0x40] sm:$0xff]
        %v306 = vld [vmem:[%s266 + $0x48] sm:$0xff]
        %v307 = vld [vmem:[%s266 + $0x50] sm:$0xff]
        %v308 = vld [vmem:[%s266 + $0x58] sm:$0xff]
        %v309 = vld [vmem:[%s266 + $0x60] sm:$0xff]
        %v310 = vld [vmem:[%s266 + $0x68] sm:$0xff]
        %v311 = vld [vmem:[%s266 + $0x70] sm:$0xff]
        %v312 = vld [vmem:[%s266 + $0x78] sm:$0xff]
        %v313 = vld [vmem:[%s266 + $0x80] sm:$0xff]
        %v314 = vld [vmem:[%s266 + $0x88] sm:$0xff]
        %v315 = vld [vmem:[%s266 + $0x90] sm:$0xff]
        %v316 = vld [vmem:[%s266 + $0x98] sm:$0xff]
        %v317 = vld [vmem:[%s266 + $0xa0] sm:$0xff]
        %v318 = vld [vmem:[%s266 + $0xa8] sm:$0xff]
        %v319 = vld [vmem:[%s266 + $0xb0] sm:$0xff]
        %v320 = vld [vmem:[%s266 + $0xb8] sm:$0xff]
        %v321 = vld [vmem:[%s266 + $0xc0] sm:$0xff]
        %v322 = vld [vmem:[%s266 + $0xc8] sm:$0xff]
        %v323 = vld [vmem:[%s266 + $0xd0] sm:$0xff]
        %v324 = vld [vmem:[%s266 + $0xd8] sm:$0xff]
        %v325 = vld [vmem:[%s266 + $0xe0] sm:$0xff]
        %v326 = vld [vmem:[%s266 + $0xe8] sm:$0xff]
        %v327 = vld [vmem:[%s266 + $0xf0] sm:$0xff]
        %v328 = vld [vmem:[%s266 + $0xf8] sm:$0xff]
        %v329 = vld [vmem:[%s1] sm:$0xff]
        %v330 = vld [vmem:[%s1 + $0x8] sm:$0xff]
        %v331 = vld [vmem:[%s1 + $0x10] sm:$0xff]
        %v332 = vld [vmem:[%s1 + $0x18] sm:$0xff]
        %v333 = vld [vmem:[%s2] sm:$0x1]
        %v335 = vlaneseq
        %v336 = vshrl.u32 %v335, 7
        %v337 = vsub.s32 0, %v336
        %v338 = vrot.slane %v333, %v337
        %vm340 = vcmask 261120
        %v342 = vsel %vm340, %v297, 0
        %v345 = vsel %vm340, %v298, 0
        %v348 = vsel %vm340, %v299, 0
        %v351 = vsel %vm340, %v300, 0
        %v354 = vsel %vm340, %v301, 0
        %v357 = vsel %vm340, %v302, 0
        %v360 = vsel %vm340, %v303, 0
        %v363 = vsel %vm340, %v304, 0
        %v366 = vsel %vm340, %v305, 0
        %v369 = vsel %vm340, %v306, 0
        %v372 = vsel %vm340, %v307, 0
        %v375 = vsel %vm340, %v308, 0
        %v378 = vsel %vm340, %v309, 0
        %v381 = vsel %vm340, %v310, 0
        %v384 = vsel %vm340, %v311, 0
        %v387 = vsel %vm340, %v312, 0
        %v390 = vsel %vm340, %v313, 0
        %v393 = vsel %vm340, %v314, 0
        %v396 = vsel %vm340, %v315, 0
        %v399 = vsel %vm340, %v316, 0
        %v402 = vsel %vm340, %v317, 0
        %v405 = vsel %vm340, %v318, 0
        %v408 = vsel %vm340, %v319, 0
        %v411 = vsel %vm340, %v320, 0
        %v414 = vsel %vm340, %v321, 0
        %v417 = vsel %vm340, %v322, 0
        %v420 = vsel %vm340, %v323, 0
        %v423 = vsel %vm340, %v324, 0
        %v426 = vsel %vm340, %v325, 0
        %v429 = vsel %vm340, %v326, 0
        %v432 = vsel %vm340, %v327, 0
        %v435 = vsel %vm340, %v328, 0
        %437 = vmatprep.subr.mxu0 0.0
        %438 = vmatpush1.msra.mxu0 %v329
        %439 = vmatprep.subr.mxu0 0.0
        %440 = vmatpush1.msra.mxu0 %v330
        %441 = vmatprep.subr.mxu0 0.0
        %442 = vmatpush1.msra.mxu0 %v331
        %443 = vmatprep.subr.mxu0 0.0
        %444 = vmatpush1.msra.mxu0 %v332
        %445 = vmatprep.subr.mxu0 0.0
        %446 = vmatpush1.msra.mxu0 0.0
        %447 = vmatprep.subr.mxu0 0.0
        %448 = vmatpush1.msra.mxu0 0.0
        %449 = vmatprep.subr.mxu0 0.0
        %450 = vmatpush1.msra.mxu0 0.0
        %451 = vmatprep.subr.mxu0 0.0
        %452 = vmatpush1.msra.mxu0 0.0
        %453 = vmatprep.subr.mxu0 0.0
        %454 = vmatpush1.msra.mxu0 0.0
        %455 = vmatprep.subr.mxu0 0.0
        %456 = vmatpush1.msra.mxu0 0.0
        %457 = vmatprep.subr.mxu0 0.0
        %458 = vmatpush1.msra.mxu0 0.0
        %459 = vmatprep.subr.mxu0 0.0
        %460 = vmatpush1.msra.mxu0 0.0
        %461 = vmatprep.subr.mxu0 0.0
        %462 = vmatpush1.msra.mxu0 0.0
        %463 = vmatprep.subr.mxu0 0.0
        %464 = vmatpush1.msra.mxu0 0.0
        %465 = vmatprep.subr.mxu0 0.0
        %466 = vmatpush1.msra.mxu0 0.0
        %467 = vmatprep.subr.mxu0 0.0
        %468 = vmatpush1.msra.mxu0 0.0
        %469 = vmatprep.subr.mxu0 0.0
        %470 = vmatpush1.msra.mxu0 0.0
        %471 = vmatprep.subr.mxu0 0.0
        %472 = vmatpush1.msra.mxu0 0.0
        %473 = vmatprep.subr.mxu0 0.0
        %474 = vmatpush1.msra.mxu0 0.0
        %475 = vmatprep.subr.mxu0 0.0
        %476 = vmatpush1.msra.mxu0 0.0
        %477 = vmatprep.subr.mxu0 0.0
        %478 = vmatpush1.msra.mxu0 0.0
        %479 = vmatprep.subr.mxu0 0.0
        %480 = vmatpush1.msra.mxu0 0.0
        %481 = vmatprep.subr.mxu0 0.0
        %482 = vmatpush1.msra.mxu0 0.0
        %483 = vmatprep.subr.mxu0 0.0
        %484 = vmatpush1.msra.mxu0 0.0
        %485 = vmatprep.subr.mxu0 0.0
        %486 = vmatpush1.msra.mxu0 0.0
        %487 = vmatprep.subr.mxu0 0.0
        %488 = vmatpush1.msra.mxu0 0.0
        %489 = vmatprep.subr.mxu0 0.0
        %490 = vmatpush1.msra.mxu0 0.0
        %491 = vmatprep.subr.mxu0 0.0
        %492 = vmatpush1.msra.mxu0 0.0
        %493 = vmatprep.subr.mxu0 0.0
        %494 = vmatpush1.msra.mxu0 0.0
        %495 = vmatprep.subr.mxu0 0.0
        %496 = vmatpush1.msra.mxu0 0.0
        %497 = vmatprep.subr.mxu0 0.0
        %498 = vmatpush1.msra.mxu0 0.0
        %499 = vmatprep.subr.mxu0 0.0
        %500 = vmatpush1.msra.mxu0 0.0
        %501 = vmatprep.mubr.f32.mxu0 0.0
        %502 = vmatmul.mubr.f32.gmra.mrb[0].mxu0 %v342
        %v503 = vpop.f32.mrb[0].mxu0
        %v504 = vadd.f32 %v338, %v503
        %v505 = vpop.f32.mrb[0].mxu0
        %506 = vmatprep.mubr.f32.mxu0 0.0
        %507 = vmatmul.mubr.f32.gmra.mrb[0].mxu0 %v345
        %v508 = vpop.f32.mrb[0].mxu0
        %v509 = vadd.f32 %v338, %v508
        %v510 = vpop.f32.mrb[0].mxu0
        %511 = vmatprep.mubr.f32.mxu0 0.0
        %512 = vmatmul.mubr.f32.gmra.mrb[0].mxu0 %v348
        %v513 = vpop.f32.mrb[0].mxu0
        %v514 = vadd.f32 %v338, %v513
        %v515 = vpop.f32.mrb[0].mxu0
        %516 = vmatprep.mubr.f32.mxu0 0.0
        %517 = vmatmul.mubr.f32.gmra.mrb[0].mxu0 %v351
        %v518 = vpop.f32.mrb[0].mxu0
        %v519 = vadd.f32 %v338, %v518
        %v520 = vpop.f32.mrb[0].mxu0
        %521 = vmatprep.mubr.f32.mxu0 0.0
        %522 = vmatmul.mubr.f32.gmra.mrb[0].mxu0 %v354
        %v523 = vpop.f32.mrb[0].mxu0
        %v524 = vadd.f32 %v338, %v523
        %v525 = vpop.f32.mrb[0].mxu0
        %526 = vmatprep.mubr.f32.mxu0 0.0
        %527 = vmatmul.mubr.f32.gmra.mrb[0].mxu0 %v357
        %v528 = vpop.f32.mrb[0].mxu0
        %v529 = vadd.f32 %v338, %v528
        %v530 = vpop.f32.mrb[0].mxu0
        %531 = vmatprep.mubr.f32.mxu0 0.0
        %532 = vmatmul.mubr.f32.gmra.mrb[0].mxu0 %v360
        %v533 = vpop.f32.mrb[0].mxu0
        %v534 = vadd.f32 %v338, %v533
        %v535 = vpop.f32.mrb[0].mxu0
        %536 = vmatprep.mubr.f32.mxu0 0.0
        %537 = vmatmul.mubr.f32.gmra.mrb[0].mxu0 %v363
        %v538 = vpop.f32.mrb[0].mxu0
        %v539 = vadd.f32 %v338, %v538
        %v540 = vpop.f32.mrb[0].mxu0
        %541 = vmatprep.mubr.f32.mxu0 0.0
        %542 = vmatmul.mubr.f32.gmra.mrb[0].mxu0 %v366
        %v543 = vpop.f32.mrb[0].mxu0
        %v544 = vadd.f32 %v338, %v543
        %v545 = vpop.f32.mrb[0].mxu0
        %546 = vmatprep.mubr.f32.mxu0 0.0
        %547 = vmatmul.mubr.f32.gmra.mrb[0].mxu0 %v369
        %v548 = vpop.f32.mrb[0].mxu0
        %v549 = vadd.f32 %v338, %v548
        %v550 = vpop.f32.mrb[0].mxu0
        %551 = vmatprep.mubr.f32.mxu0 0.0
        %552 = vmatmul.mubr.f32.gmra.mrb[0].mxu0 %v372
        %v553 = vpop.f32.mrb[0].mxu0
        %v554 = vadd.f32 %v338, %v553
        %v555 = vpop.f32.mrb[0].mxu0
        %556 = vmatprep.mubr.f32.mxu0 0.0
        %557 = vmatmul.mubr.f32.gmra.mrb[0].mxu0 %v375
        %v558 = vpop.f32.mrb[0].mxu0
        %v559 = vadd.f32 %v338, %v558
        %v560 = vpop.f32.mrb[0].mxu0
        %561 = vmatprep.mubr.f32.mxu0 0.0
        %562 = vmatmul.mubr.f32.gmra.mrb[0].mxu0 %v378
        %v563 = vpop.f32.mrb[0].mxu0
        %v564 = vadd.f32 %v338, %v563
        %v565 = vpop.f32.mrb[0].mxu0
        %566 = vmatprep.mubr.f32.mxu0 0.0
        %567 = vmatmul.mubr.f32.gmra.mrb[0].mxu0 %v381
        %v568 = vpop.f32.mrb[0].mxu0
        %v569 = vadd.f32 %v338, %v568
        %v570 = vpop.f32.mrb[0].mxu0
        %571 = vmatprep.mubr.f32.mxu0 0.0
        %572 = vmatmul.mubr.f32.gmra.mrb[0].mxu0 %v384
        %v573 = vpop.f32.mrb[0].mxu0
        %v574 = vadd.f32 %v338, %v573
        %v575 = vpop.f32.mrb[0].mxu0
        %576 = vmatprep.mubr.f32.mxu0 0.0
        %577 = vmatmul.mubr.f32.gmra.mrb[0].mxu0 %v387
        %v578 = vpop.f32.mrb[0].mxu0
        %v579 = vadd.f32 %v338, %v578
        %v580 = vpop.f32.mrb[0].mxu0
        %581 = vmatprep.mubr.f32.mxu0 0.0
        %582 = vmatmul.mubr.f32.gmra.mrb[0].mxu0 %v390
        %v583 = vpop.f32.mrb[0].mxu0
        %v584 = vadd.f32 %v338, %v583
        %v585 = vpop.f32.mrb[0].mxu0
        %586 = vmatprep.mubr.f32.mxu0 0.0
        %587 = vmatmul.mubr.f32.gmra.mrb[0].mxu0 %v393
        %v588 = vpop.f32.mrb[0].mxu0
        %v589 = vadd.f32 %v338, %v588
        %v590 = vpop.f32.mrb[0].mxu0
        %591 = vmatprep.mubr.f32.mxu0 0.0
        %592 = vmatmul.mubr.f32.gmra.mrb[0].mxu0 %v396
        %v593 = vpop.f32.mrb[0].mxu0
        %v594 = vadd.f32 %v338, %v593
        %v595 = vpop.f32.mrb[0].mxu0
        %596 = vmatprep.mubr.f32.mxu0 0.0
        %597 = vmatmul.mubr.f32.gmra.mrb[0].mxu0 %v399
        %v598 = vpop.f32.mrb[0].mxu0
        %v599 = vadd.f32 %v338, %v598
        %v600 = vpop.f32.mrb[0].mxu0
        %601 = vmatprep.mubr.f32.mxu0 0.0
        %602 = vmatmul.mubr.f32.gmra.mrb[0].mxu0 %v402
        %v603 = vpop.f32.mrb[0].mxu0
        %v604 = vadd.f32 %v338, %v603
        %v605 = vpop.f32.mrb[0].mxu0
        %606 = vmatprep.mubr.f32.mxu0 0.0
        %607 = vmatmul.mubr.f32.gmra.mrb[0].mxu0 %v405
        %v608 = vpop.f32.mrb[0].mxu0
        %v609 = vadd.f32 %v338, %v608
        %v610 = vpop.f32.mrb[0].mxu0
        %611 = vmatprep.mubr.f32.mxu0 0.0
        %612 = vmatmul.mubr.f32.gmra.mrb[0].mxu0 %v408
        %v613 = vpop.f32.mrb[0].mxu0
        %v614 = vadd.f32 %v338, %v613
        %v615 = vpop.f32.mrb[0].mxu0
        %616 = vmatprep.mubr.f32.mxu0 0.0
        %617 = vmatmul.mubr.f32.gmra.mrb[0].mxu0 %v411
        %v618 = vpop.f32.mrb[0].mxu0
        %v619 = vadd.f32 %v338, %v618
        %v620 = vpop.f32.mrb[0].mxu0
        %621 = vmatprep.mubr.f32.mxu0 0.0
        %622 = vmatmul.mubr.f32.gmra.mrb[0].mxu0 %v414
        %v623 = vpop.f32.mrb[0].mxu0
        %v624 = vadd.f32 %v338, %v623
        %v625 = vpop.f32.mrb[0].mxu0
        %626 = vmatprep.mubr.f32.mxu0 0.0
        %627 = vmatmul.mubr.f32.gmra.mrb[0].mxu0 %v417
        %v628 = vpop.f32.mrb[0].mxu0
        %v629 = vadd.f32 %v338, %v628
        %v630 = vpop.f32.mrb[0].mxu0
        %631 = vmatprep.mubr.f32.mxu0 0.0
        %632 = vmatmul.mubr.f32.gmra.mrb[0].mxu0 %v420
        %v633 = vpop.f32.mrb[0].mxu0
        %v634 = vadd.f32 %v338, %v633
        %v635 = vpop.f32.mrb[0].mxu0
        %636 = vmatprep.mubr.f32.mxu0 0.0
        %637 = vmatmul.mubr.f32.gmra.mrb[0].mxu0 %v423
        %v638 = vpop.f32.mrb[0].mxu0
        %v639 = vadd.f32 %v338, %v638
        %v640 = vpop.f32.mrb[0].mxu0
        %641 = vmatprep.mubr.f32.mxu0 0.0
        %642 = vmatmul.mubr.f32.gmra.mrb[0].mxu0 %v426
        %v643 = vpop.f32.mrb[0].mxu0
        %v644 = vadd.f32 %v338, %v643
        %v645 = vpop.f32.mrb[0].mxu0
        %646 = vmatprep.mubr.f32.mxu0 0.0
        %647 = vmatmul.mubr.f32.gmra.mrb[0].mxu0 %v429
        %v648 = vpop.f32.mrb[0].mxu0
        %v649 = vadd.f32 %v338, %v648
        %v650 = vpop.f32.mrb[0].mxu0
        %651 = vmatprep.mubr.f32.mxu0 0.0
        %652 = vmatmul.mubr.f32.gmra.mrb[0].mxu0 %v432
        %v653 = vpop.f32.mrb[0].mxu0
        %v654 = vadd.f32 %v338, %v653
        %v655 = vpop.f32.mrb[0].mxu0
        %656 = vmatprep.mubr.f32.mxu0 0.0
        %657 = vmatmul.mubr.f32.gmra.mrb[0].mxu0 %v435
        %v658 = vpop.f32.mrb[0].mxu0
        %v659 = vadd.f32 %v338, %v658
        %v660 = vpop.f32.mrb[0].mxu0
        %661 = vdwg.mxu0
        %v662 = vmax.f32 %v504, 0.0
        %v663 = vmax.f32 %v509, 0.0
        %v664 = vmax.f32 %v514, 0.0
        %v665 = vmax.f32 %v519, 0.0
        %v666 = vmax.f32 %v524, 0.0
        %v667 = vmax.f32 %v529, 0.0
        %v668 = vmax.f32 %v534, 0.0
        %v669 = vmax.f32 %v539, 0.0
        %v670 = vmax.f32 %v544, 0.0
        %v671 = vmax.f32 %v549, 0.0
        %v672 = vmax.f32 %v554, 0.0
        %v673 = vmax.f32 %v559, 0.0
        %v674 = vmax.f32 %v564, 0.0
        %v675 = vmax.f32 %v569, 0.0
        %v676 = vmax.f32 %v574, 0.0
        %v677 = vmax.f32 %v579, 0.0
        %v678 = vmax.f32 %v584, 0.0
        %v679 = vmax.f32 %v589, 0.0
        %v680 = vmax.f32 %v594, 0.0
        %v681 = vmax.f32 %v599, 0.0
        %v682 = vmax.f32 %v604, 0.0
        %v683 = vmax.f32 %v609, 0.0
        %v684 = vmax.f32 %v614, 0.0
        %v685 = vmax.f32 %v619, 0.0
        %v686 = vmax.f32 %v624, 0.0
        %v687 = vmax.f32 %v629, 0.0
        %v688 = vmax.f32 %v634, 0.0
        %v689 = vmax.f32 %v639, 0.0
        %v690 = vmax.f32 %v644, 0.0
        %v691 = vmax.f32 %v649, 0.0
        %v692 = vmax.f32 %v654, 0.0
        %v693 = vmax.f32 %v659, 0.0
        %v694 = vlaneseq
        %v695 = vshrl.u32 %v694, 7
        %v696 = vadd.s32 %v695, 8
        %vm697 = vcmp.ge.s32.totalorder %v695, 1
        %vm698 = vcmp.ge.s32.totalorder %v696, 1
        %v699 = vrot.slane %v662, 7
        %v700 = vrot.slane %v663, 7
        %v701 = vrot.slane %v664, 7
        %v702 = vrot.slane %v665, 7
        %v703 = vrot.slane %v666, 7
        %v704 = vrot.slane %v667, 7
        %v705 = vrot.slane %v668, 7
        %v706 = vrot.slane %v669, 7
        %v707 = vrot.slane %v670, 7
        %v708 = vrot.slane %v671, 7
        %v709 = vrot.slane %v672, 7
        %v710 = vrot.slane %v673, 7
        %v711 = vrot.slane %v674, 7
        %v712 = vrot.slane %v675, 7
        %v713 = vrot.slane %v676, 7
        %v714 = vrot.slane %v677, 7
        %v715 = vrot.slane %v678, 7
        %v716 = vrot.slane %v679, 7
        %v717 = vrot.slane %v680, 7
        %v718 = vrot.slane %v681, 7
        %v719 = vrot.slane %v682, 7
        %v720 = vrot.slane %v683, 7
        %v721 = vrot.slane %v684, 7
        %v722 = vrot.slane %v685, 7
        %v723 = vrot.slane %v686, 7
        %v724 = vrot.slane %v687, 7
        %v725 = vrot.slane %v688, 7
        %v726 = vrot.slane %v689, 7
        %v727 = vrot.slane %v690, 7
        %v728 = vrot.slane %v691, 7
        %v729 = vrot.slane %v693, 7
        %vm730 = vcmp.lt.s32.totalorder %v695, 1
        %v731 = vsel %vm730, %v727, %v728
        %v732 = vsel %vm730, %v726, %v727
        %v733 = vsel %vm730, %v725, %v726
        %v734 = vsel %vm730, %v724, %v725
        %v735 = vsel %vm730, %v723, %v724
        %v736 = vsel %vm730, %v722, %v723
        %v737 = vsel %vm730, %v721, %v722
        %v738 = vsel %vm730, %v720, %v721
        %v739 = vsel %vm730, %v719, %v720
        %v740 = vsel %vm730, %v718, %v719
        %v741 = vsel %vm730, %v717, %v718
        %v742 = vsel %vm730, %v716, %v717
        %v743 = vsel %vm730, %v715, %v716
        %v744 = vsel %vm730, %v714, %v715
        %v745 = vsel %vm730, %v713, %v714
        %v746 = vsel %vm730, %v712, %v713
        %v747 = vsel %vm730, %v711, %v712
        %v748 = vsel %vm730, %v710, %v711
        %v749 = vsel %vm730, %v709, %v710
        %v750 = vsel %vm730, %v708, %v709
        %v751 = vsel %vm730, %v707, %v708
        %v752 = vsel %vm730, %v706, %v707
        %v753 = vsel %vm730, %v705, %v706
        %v754 = vsel %vm730, %v704, %v705
        %v755 = vsel %vm730, %v703, %v704
        %v756 = vsel %vm730, %v702, %v703
        %v757 = vsel %vm730, %v701, %v702
        %v758 = vsel %vm730, %v700, %v701
        %v759 = vsel %vm730, %v699, %v700
        %v760 = vsel %vm730, %v729, %v699
        %v761 = vsel %vm697, %v760, 0.0
        %v762 = vsel %vm698, %v759, 0.0
        %v763 = vsel %vm697, %v758, 0.0
        %v764 = vsel %vm698, %v757, 0.0
        %v765 = vsel %vm697, %v756, 0.0
        %v766 = vsel %vm698, %v755, 0.0
        %v767 = vsel %vm697, %v754, 0.0
        %v768 = vsel %vm698, %v753, 0.0
        %v769 = vsel %vm697, %v752, 0.0
        %v770 = vsel %vm698, %v751, 0.0
        %v771 = vsel %vm697, %v750, 0.0
        %v772 = vsel %vm698, %v749, 0.0
        %v773 = vsel %vm697, %v748, 0.0
        %v774 = vsel %vm698, %v747, 0.0
        %v775 = vsel %vm697, %v746, 0.0
        %v776 = vsel %vm698, %v745, 0.0
        %v777 = vsel %vm697, %v744, 0.0
        %v778 = vsel %vm698, %v743, 0.0
        %v779 = vsel %vm697, %v742, 0.0
        %v780 = vsel %vm698, %v741, 0.0
        %v781 = vsel %vm697, %v740, 0.0
        %v782 = vsel %vm698, %v739, 0.0
        %v783 = vsel %vm697, %v738, 0.0
        %v784 = vsel %vm698, %v737, 0.0
        %v785 = vsel %vm697, %v736, 0.0
        %v786 = vsel %vm698, %v735, 0.0
        %v787 = vsel %vm697, %v734, 0.0
        %v788 = vsel %vm698, %v733, 0.0
        %v789 = vsel %vm697, %v732, 0.0
        %v790 = vsel %vm698, %v731, 0.0
        %vm791 = vcmask 64512
        %792 = vst.msk [vmem:[#allocation2] sm:$0xff] %vm791, 0.0
        %793 = vst.msk [vmem:[#allocation2 + $0x8] sm:$0xff] %vm791, 0.0
        %794 = vst.msk [vmem:[#allocation2 + $0x10] sm:$0xff] %vm791, %v761
        %795 = vst.msk [vmem:[#allocation2 + $0x18] sm:$0xff] %vm791, %v762
        %796 = vst.msk [vmem:[#allocation2 + $0x20] sm:$0xff] %vm791, %v763
        %797 = vst.msk [vmem:[#allocation2 + $0x28] sm:$0xff] %vm791, %v764
        %798 = vst.msk [vmem:[#allocation2 + $0x30] sm:$0xff] %vm791, %v765
        %799 = vst.msk [vmem:[#allocation2 + $0x38] sm:$0xff] %vm791, %v766
        %800 = vst.msk [vmem:[#allocation2 + $0x40] sm:$0xff] %vm791, %v767
        %801 = vst.msk [vmem:[#allocation2 + $0x48] sm:$0xff] %vm791, %v768
        %802 = vst.msk [vmem:[#allocation2 + $0x50] sm:$0xff] %vm791, %v769
        %803 = vst.msk [vmem:[#allocation2 + $0x58] sm:$0xff] %vm791, %v770
        %804 = vst.msk [vmem:[#allocation2 + $0x60] sm:$0xff] %vm791, %v771
        %805 = vst.msk [vmem:[#allocation2 + $0x68] sm:$0xff] %vm791, %v772
        %806 = vst.msk [vmem:[#allocation2 + $0x70] sm:$0xff] %vm791, %v773
        %807 = vst.msk [vmem:[#allocation2 + $0x78] sm:$0xff] %vm791, %v774
        %808 = vst.msk [vmem:[#allocation2 + $0x80] sm:$0xff] %vm791, %v775
        %809 = vst.msk [vmem:[#allocation2 + $0x88] sm:$0xff] %vm791, %v776
        %810 = vst.msk [vmem:[#allocation2 + $0x90] sm:$0xff] %vm791, %v777
        %811 = vst.msk [vmem:[#allocation2 + $0x98] sm:$0xff] %vm791, %v778
        %812 = vst.msk [vmem:[#allocation2 + $0xa0] sm:$0xff] %vm791, %v779
        %813 = vst.msk [vmem:[#allocation2 + $0xa8] sm:$0xff] %vm791, %v780
        %814 = vst.msk [vmem:[#allocation2 + $0xb0] sm:$0xff] %vm791, %v781
        %815 = vst.msk [vmem:[#allocation2 + $0xb8] sm:$0xff] %vm791, %v782
        %816 = vst.msk [vmem:[#allocation2 + $0xc0] sm:$0xff] %vm791, %v783
        %817 = vst.msk [vmem:[#allocation2 + $0xc8] sm:$0xff] %vm791, %v784
        %818 = vst.msk [vmem:[#allocation2 + $0xd0] sm:$0xff] %vm791, %v785
        %819 = vst.msk [vmem:[#allocation2 + $0xd8] sm:$0xff] %vm791, %v786
        %820 = vst.msk [vmem:[#allocation2 + $0xe0] sm:$0xff] %vm791, %v787
        %821 = vst.msk [vmem:[#allocation2 + $0xe8] sm:$0xff] %vm791, %v788
        %822 = vst.msk [vmem:[#allocation2 + $0xf0] sm:$0xff] %vm791, %v789
        %823 = vst.msk [vmem:[#allocation2 + $0xf8] sm:$0xff] %vm791, %v790
        %855 = vrot.lane.b32.xlu0 0.0, 8
        %v856 = vpop.permute.xlu0 %855
        %857 = vrot.lane.b32.xlu0 %v662, 8
        %v858 = vpop.permute.xlu0 %857
        %859 = vrot.lane.b32.xlu0 %v663, 8
        %v860 = vpop.permute.xlu0 %859
        %861 = vrot.lane.b32.xlu0 %v664, 8
        %v862 = vpop.permute.xlu0 %861
        %863 = vrot.lane.b32.xlu0 %v665, 8
        %v864 = vpop.permute.xlu0 %863
        %865 = vrot.lane.b32.xlu0 %v666, 8
        %v866 = vpop.permute.xlu0 %865
        %867 = vrot.lane.b32.xlu0 %v667, 8
        %v868 = vpop.permute.xlu0 %867
        %869 = vrot.lane.b32.xlu0 %v668, 8
        %v870 = vpop.permute.xlu0 %869
        %871 = vrot.lane.b32.xlu0 %v669, 8
        %v872 = vpop.permute.xlu0 %871
        %873 = vrot.lane.b32.xlu0 %v670, 8
        %v874 = vpop.permute.xlu0 %873
        %875 = vrot.lane.b32.xlu0 %v671, 8
        %v876 = vpop.permute.xlu0 %875
        %877 = vrot.lane.b32.xlu0 %v672, 8
        %v878 = vpop.permute.xlu0 %877
        %879 = vrot.lane.b32.xlu0 %v673, 8
        %v880 = vpop.permute.xlu0 %879
        %881 = vrot.lane.b32.xlu0 %v674, 8
        %v882 = vpop.permute.xlu0 %881
        %883 = vrot.lane.b32.xlu0 %v675, 8
        %v884 = vpop.permute.xlu0 %883
        %885 = vrot.lane.b32.xlu0 %v676, 8
        %v886 = vpop.permute.xlu0 %885
        %887 = vrot.lane.b32.xlu0 %v677, 8
        %v888 = vpop.permute.xlu0 %887
        %889 = vrot.lane.b32.xlu0 %v678, 8
        %v890 = vpop.permute.xlu0 %889
        %891 = vrot.lane.b32.xlu0 %v679, 8
        %v892 = vpop.permute.xlu0 %891
        %893 = vrot.lane.b32.xlu0 %v680, 8
        %v894 = vpop.permute.xlu0 %893
        %895 = vrot.lane.b32.xlu0 %v681, 8
        %v896 = vpop.permute.xlu0 %895
        %897 = vrot.lane.b32.xlu0 %v682, 8
        %v898 = vpop.permute.xlu0 %897
        %899 = vrot.lane.b32.xlu0 %v683, 8
        %v900 = vpop.permute.xlu0 %899
        %901 = vrot.lane.b32.xlu0 %v684, 8
        %v902 = vpop.permute.xlu0 %901
        %903 = vrot.lane.b32.xlu0 %v685, 8
        %v904 = vpop.permute.xlu0 %903
        %905 = vrot.lane.b32.xlu0 %v686, 8
        %v906 = vpop.permute.xlu0 %905
        %907 = vrot.lane.b32.xlu0 %v687, 8
        %v908 = vpop.permute.xlu0 %907
        %909 = vrot.lane.b32.xlu0 %v688, 8
        %v910 = vpop.permute.xlu0 %909
        %911 = vrot.lane.b32.xlu0 %v689, 8
        %v912 = vpop.permute.xlu0 %911
        %913 = vrot.lane.b32.xlu0 %v690, 8
        %v914 = vpop.permute.xlu0 %913
        %915 = vrot.lane.b32.xlu0 %v691, 8
        %v916 = vpop.permute.xlu0 %915
        %vm948 = vcmask 130112
        %949 = vst.msk [vmem:[#allocation2] sm:$0xff] %vm948, %v856
        %950 = vst.msk [vmem:[#allocation2 + $0x8] sm:$0xff] %vm948, %v856
        %951 = vst.msk [vmem:[#allocation2 + $0x10] sm:$0xff] %vm948, %v858
        %952 = vst.msk [vmem:[#allocation2 + $0x18] sm:$0xff] %vm948, %v860
        %953 = vst.msk [vmem:[#allocation2 + $0x20] sm:$0xff] %vm948, %v862
        %954 = vst.msk [vmem:[#allocation2 + $0x28] sm:$0xff] %vm948, %v864
        %955 = vst.msk [vmem:[#allocation2 + $0x30] sm:$0xff] %vm948, %v866
        %956 = vst.msk [vmem:[#allocation2 + $0x38] sm:$0xff] %vm948, %v868
        %957 = vst.msk [vmem:[#allocation2 + $0x40] sm:$0xff] %vm948, %v870
        %958 = vst.msk [vmem:[#allocation2 + $0x48] sm:$0xff] %vm948, %v872
        %959 = vst.msk [vmem:[#allocation2 + $0x50] sm:$0xff] %vm948, %v874
        %960 = vst.msk [vmem:[#allocation2 + $0x58] sm:$0xff] %vm948, %v876
        %961 = vst.msk [vmem:[#allocation2 + $0x60] sm:$0xff] %vm948, %v878
        %962 = vst.msk [vmem:[#allocation2 + $0x68] sm:$0xff] %vm948, %v880
        %963 = vst.msk [vmem:[#allocation2 + $0x70] sm:$0xff] %vm948, %v882
        %964 = vst.msk [vmem:[#allocation2 + $0x78] sm:$0xff] %vm948, %v884
        %965 = vst.msk [vmem:[#allocation2 + $0x80] sm:$0xff] %vm948, %v886
        %966 = vst.msk [vmem:[#allocation2 + $0x88] sm:$0xff] %vm948, %v888
        %967 = vst.msk [vmem:[#allocation2 + $0x90] sm:$0xff] %vm948, %v890
        %968 = vst.msk [vmem:[#allocation2 + $0x98] sm:$0xff] %vm948, %v892
        %969 = vst.msk [vmem:[#allocation2 + $0xa0] sm:$0xff] %vm948, %v894
        %970 = vst.msk [vmem:[#allocation2 + $0xa8] sm:$0xff] %vm948, %v896
        %971 = vst.msk [vmem:[#allocation2 + $0xb0] sm:$0xff] %vm948, %v898
        %972 = vst.msk [vmem:[#allocation2 + $0xb8] sm:$0xff] %vm948, %v900
        %973 = vst.msk [vmem:[#allocation2 + $0xc0] sm:$0xff] %vm948, %v902
        %974 = vst.msk [vmem:[#allocation2 + $0xc8] sm:$0xff] %vm948, %v904
        %975 = vst.msk [vmem:[#allocation2 + $0xd0] sm:$0xff] %vm948, %v906
        %976 = vst.msk [vmem:[#allocation2 + $0xd8] sm:$0xff] %vm948, %v908
        %977 = vst.msk [vmem:[#allocation2 + $0xe0] sm:$0xff] %vm948, %v910
        %978 = vst.msk [vmem:[#allocation2 + $0xe8] sm:$0xff] %vm948, %v912
        %979 = vst.msk [vmem:[#allocation2 + $0xf0] sm:$0xff] %vm948, %v914
        %980 = vst.msk [vmem:[#allocation2 + $0xf8] sm:$0xff] %vm948, %v916
        %vm981 = vcmp.le.s32.totalorder %v695, 14
        %vm982 = vcmp.le.s32.totalorder %v696, 14
        %v983 = vrot.slane %v662, 1
        %v984 = vrot.slane %v663, 1
        %v985 = vrot.slane %v664, 1
        %v986 = vrot.slane %v665, 1
        %v987 = vrot.slane %v666, 1
        %v988 = vrot.slane %v667, 1
        %v989 = vrot.slane %v668, 1
        %v990 = vrot.slane %v669, 1
        %v991 = vrot.slane %v670, 1
        %v992 = vrot.slane %v671, 1
        %v993 = vrot.slane %v672, 1
        %v994 = vrot.slane %v673, 1
        %v995 = vrot.slane %v674, 1
        %v996 = vrot.slane %v675, 1
        %v997 = vrot.slane %v676, 1
        %v998 = vrot.slane %v677, 1
        %v999 = vrot.slane %v678, 1
        %v1000 = vrot.slane %v679, 1
        %v1001 = vrot.slane %v680, 1
        %v1002 = vrot.slane %v681, 1
        %v1003 = vrot.slane %v682, 1
        %v1004 = vrot.slane %v683, 1
        %v1005 = vrot.slane %v684, 1
        %v1006 = vrot.slane %v685, 1
        %v1007 = vrot.slane %v686, 1
        %v1008 = vrot.slane %v687, 1
        %v1009 = vrot.slane %v688, 1
        %v1010 = vrot.slane %v689, 1
        %v1011 = vrot.slane %v690, 1
        %v1012 = vrot.slane %v691, 1
        %v1013 = vrot.slane %v692, 1
        %vm1014 = vcmp.lt.s32.totalorder %v695, 7
        %v1015 = vsel %vm1014, %v1012, %v1013
        %v1016 = vsel %vm1014, %v1011, %v1012
        %v1017 = vsel %vm1014, %v1010, %v1011
        %v1018 = vsel %vm1014, %v1009, %v1010
        %v1019 = vsel %vm1014, %v1008, %v1009
        %v1020 = vsel %vm1014, %v1007, %v1008
        %v1021 = vsel %vm1014, %v1006, %v1007
        %v1022 = vsel %vm1014, %v1005, %v1006
        %v1023 = vsel %vm1014, %v1004, %v1005
        %v1024 = vsel %vm1014, %v1003, %v1004
        %v1025 = vsel %vm1014, %v1002, %v1003
        %v1026 = vsel %vm1014, %v1001, %v1002
        %v1027 = vsel %vm1014, %v1000, %v1001
        %v1028 = vsel %vm1014, %v999, %v1000
        %v1029 = vsel %vm1014, %v998, %v999
        %v1030 = vsel %vm1014, %v997, %v998
        %v1031 = vsel %vm1014, %v996, %v997
        %v1032 = vsel %vm1014, %v995, %v996
        %v1033 = vsel %vm1014, %v994, %v995
        %v1034 = vsel %vm1014, %v993, %v994
        %v1035 = vsel %vm1014, %v992, %v993
        %v1036 = vsel %vm1014, %v991, %v992
        %v1037 = vsel %vm1014, %v990, %v991
        %v1038 = vsel %vm1014, %v989, %v990
        %v1039 = vsel %vm1014, %v988, %v989
        %v1040 = vsel %vm1014, %v987, %v988
        %v1041 = vsel %vm1014, %v986, %v987
        %v1042 = vsel %vm1014, %v985, %v986
        %v1043 = vsel %vm1014, %v984, %v985
        %v1044 = vsel %vm1014, %v983, %v984
        %v1045 = vsel %vm981, %v1044, 0.0
        %v1046 = vsel %vm982, %v1043, 0.0
        %v1047 = vsel %vm981, %v1042, 0.0
        %v1048 = vsel %vm982, %v1041, 0.0
        %v1049 = vsel %vm981, %v1040, 0.0
        %v1050 = vsel %vm982, %v1039, 0.0
        %v1051 = vsel %vm981, %v1038, 0.0
        %v1052 = vsel %vm982, %v1037, 0.0
        %v1053 = vsel %vm981, %v1036, 0.0
        %v1054 = vsel %vm982, %v1035, 0.0
        %v1055 = vsel %vm981, %v1034, 0.0
        %v1056 = vsel %vm982, %v1033, 0.0
        %v1057 = vsel %vm981, %v1032, 0.0
        %v1058 = vsel %vm982, %v1031, 0.0
        %v1059 = vsel %vm981, %v1030, 0.0
        %v1060 = vsel %vm982, %v1029, 0.0
        %v1061 = vsel %vm981, %v1028, 0.0
        %v1062 = vsel %vm982, %v1027, 0.0
        %v1063 = vsel %vm981, %v1026, 0.0
        %v1064 = vsel %vm982, %v1025, 0.0
        %v1065 = vsel %vm981, %v1024, 0.0
        %v1066 = vsel %vm982, %v1023, 0.0
        %v1067 = vsel %vm981, %v1022, 0.0
        %v1068 = vsel %vm982, %v1021, 0.0
        %v1069 = vsel %vm981, %v1020, 0.0
        %v1070 = vsel %vm982, %v1019, 0.0
        %v1071 = vsel %vm981, %v1018, 0.0
        %v1072 = vsel %vm982, %v1017, 0.0
        %v1073 = vsel %vm981, %v1016, 0.0
        %v1074 = vsel %vm982, %v1015, 0.0
        %1105 = vrot.lane.b32.xlu0 0.0, 16
        %v1106 = vpop.permute.xlu0 %1105
        %1107 = vrot.lane.b32.xlu0 %v1045, 16
        %v1108 = vpop.permute.xlu0 %1107
        %1109 = vrot.lane.b32.xlu0 %v1046, 16
        %v1110 = vpop.permute.xlu0 %1109
        %1111 = vrot.lane.b32.xlu0 %v1047, 16
        %v1112 = vpop.permute.xlu0 %1111
        %1113 = vrot.lane.b32.xlu0 %v1048, 16
        %v1114 = vpop.permute.xlu0 %1113
        %1115 = vrot.lane.b32.xlu0 %v1049, 16
        %v1116 = vpop.permute.xlu0 %1115
        %1117 = vrot.lane.b32.xlu0 %v1050, 16
        %v1118 = vpop.permute.xlu0 %1117
        %1119 = vrot.lane.b32.xlu0 %v1051, 16
        %v1120 = vpop.permute.xlu0 %1119
        %1121 = vrot.lane.b32.xlu0 %v1052, 16
        %v1122 = vpop.permute.xlu0 %1121
        %1123 = vrot.lane.b32.xlu0 %v1053, 16
        %v1124 = vpop.permute.xlu0 %1123
        %1125 = vrot.lane.b32.xlu0 %v1054, 16
        %v1126 = vpop.permute.xlu0 %1125
        %1127 = vrot.lane.b32.xlu0 %v1055, 16
        %v1128 = vpop.permute.xlu0 %1127
        %1129 = vrot.lane.b32.xlu0 %v1056, 16
        %v1130 = vpop.permute.xlu0 %1129
        %1131 = vrot.lane.b32.xlu0 %v1057, 16
        %v1132 = vpop.permute.xlu0 %1131
        %1133 = vrot.lane.b32.xlu0 %v1058, 16
        %v1134 = vpop.permute.xlu0 %1133
        %1135 = vrot.lane.b32.xlu0 %v1059, 16
        %v1136 = vpop.permute.xlu0 %1135
        %1137 = vrot.lane.b32.xlu0 %v1060, 16
        %v1138 = vpop.permute.xlu0 %1137
        %1139 = vrot.lane.b32.xlu0 %v1061, 16
        %v1140 = vpop.permute.xlu0 %1139
        %1141 = vrot.lane.b32.xlu0 %v1062, 16
        %v1142 = vpop.permute.xlu0 %1141
        %1143 = vrot.lane.b32.xlu0 %v1063, 16
        %v1144 = vpop.permute.xlu0 %1143
        %1145 = vrot.lane.b32.xlu0 %v1064, 16
        %v1146 = vpop.permute.xlu0 %1145
        %1147 = vrot.lane.b32.xlu0 %v1065, 16
        %v1148 = vpop.permute.xlu0 %1147
        %1149 = vrot.lane.b32.xlu0 %v1066, 16
        %v1150 = vpop.permute.xlu0 %1149
        %1151 = vrot.lane.b32.xlu0 %v1067, 16
        %v1152 = vpop.permute.xlu0 %1151
        %1153 = vrot.lane.b32.xlu0 %v1068, 16
        %v1154 = vpop.permute.xlu0 %1153
        %1155 = vrot.lane.b32.xlu0 %v1069, 16
        %v1156 = vpop.permute.xlu0 %1155
        %1157 = vrot.lane.b32.xlu0 %v1070, 16
        %v1158 = vpop.permute.xlu0 %1157
        %1159 = vrot.lane.b32.xlu0 %v1071, 16
        %v1160 = vpop.permute.xlu0 %1159
        %1161 = vrot.lane.b32.xlu0 %v1072, 16
        %v1162 = vpop.permute.xlu0 %1161
        %1163 = vrot.lane.b32.xlu0 %v1073, 16
        %v1164 = vpop.permute.xlu0 %1163
        %1165 = vrot.lane.b32.xlu0 %v1074, 16
        %v1166 = vpop.permute.xlu0 %1165
        %vm1198 = vcmask 195712
        %1199 = vst.msk [vmem:[#allocation2] sm:$0xff] %vm1198, %v1106
        %1200 = vst.msk [vmem:[#allocation2 + $0x8] sm:$0xff] %vm1198, %v1106
        %1201 = vst.msk [vmem:[#allocation2 + $0x10] sm:$0xff] %vm1198, %v1108
        %1202 = vst.msk [vmem:[#allocation2 + $0x18] sm:$0xff] %vm1198, %v1110
        %1203 = vst.msk [vmem:[#allocation2 + $0x20] sm:$0xff] %vm1198, %v1112
        %1204 = vst.msk [vmem:[#allocation2 + $0x28] sm:$0xff] %vm1198, %v1114
        %1205 = vst.msk [vmem:[#allocation2 + $0x30] sm:$0xff] %vm1198, %v1116
        %1206 = vst.msk [vmem:[#allocation2 + $0x38] sm:$0xff] %vm1198, %v1118
        %1207 = vst.msk [vmem:[#allocation2 + $0x40] sm:$0xff] %vm1198, %v1120
        %1208 = vst.msk [vmem:[#allocation2 + $0x48] sm:$0xff] %vm1198, %v1122
        %1209 = vst.msk [vmem:[#allocation2 + $0x50] sm:$0xff] %vm1198, %v1124
        %1210 = vst.msk [vmem:[#allocation2 + $0x58] sm:$0xff] %vm1198, %v1126
        %1211 = vst.msk [vmem:[#allocation2 + $0x60] sm:$0xff] %vm1198, %v1128
        %1212 = vst.msk [vmem:[#allocation2 + $0x68] sm:$0xff] %vm1198, %v1130
        %1213 = vst.msk [vmem:[#allocation2 + $0x70] sm:$0xff] %vm1198, %v1132
        %1214 = vst.msk [vmem:[#allocation2 + $0x78] sm:$0xff] %vm1198, %v1134
        %1215 = vst.msk [vmem:[#allocation2 + $0x80] sm:$0xff] %vm1198, %v1136
        %1216 = vst.msk [vmem:[#allocation2 + $0x88] sm:$0xff] %vm1198, %v1138
        %1217 = vst.msk [vmem:[#allocation2 + $0x90] sm:$0xff] %vm1198, %v1140
        %1218 = vst.msk [vmem:[#allocation2 + $0x98] sm:$0xff] %vm1198, %v1142
        %1219 = vst.msk [vmem:[#allocation2 + $0xa0] sm:$0xff] %vm1198, %v1144
        %1220 = vst.msk [vmem:[#allocation2 + $0xa8] sm:$0xff] %vm1198, %v1146
        %1221 = vst.msk [vmem:[#allocation2 + $0xb0] sm:$0xff] %vm1198, %v1148
        %1222 = vst.msk [vmem:[#allocation2 + $0xb8] sm:$0xff] %vm1198, %v1150
        %1223 = vst.msk [vmem:[#allocation2 + $0xc0] sm:$0xff] %vm1198, %v1152
        %1224 = vst.msk [vmem:[#allocation2 + $0xc8] sm:$0xff] %vm1198, %v1154
        %1225 = vst.msk [vmem:[#allocation2 + $0xd0] sm:$0xff] %vm1198, %v1156
        %1226 = vst.msk [vmem:[#allocation2 + $0xd8] sm:$0xff] %vm1198, %v1158
        %1227 = vst.msk [vmem:[#allocation2 + $0xe0] sm:$0xff] %vm1198, %v1160
        %1228 = vst.msk [vmem:[#allocation2 + $0xe8] sm:$0xff] %vm1198, %v1162
        %1229 = vst.msk [vmem:[#allocation2 + $0xf0] sm:$0xff] %vm1198, %v1164
        %1230 = vst.msk [vmem:[#allocation2 + $0xf8] sm:$0xff] %vm1198, %v1166
        %v1231 = vrot.slane %v692, 7
        %v1232 = vsel %vm730, %v1231, %v729
        %v1233 = vsel %vm730, %v728, %v1231
        %v1234 = vsel %vm697, %v1233, 0.0
        %v1235 = vsel %vm698, %v1232, 0.0
        %1268 = vrot.lane.b32.xlu0 %v761, 24
        %v1269 = vpop.permute.xlu0 %1268
        %1270 = vrot.lane.b32.xlu0 %v762, 24
        %v1271 = vpop.permute.xlu0 %1270
        %1272 = vrot.lane.b32.xlu0 %v763, 24
        %v1273 = vpop.permute.xlu0 %1272
        %1274 = vrot.lane.b32.xlu0 %v764, 24
        %v1275 = vpop.permute.xlu0 %1274
        %1276 = vrot.lane.b32.xlu0 %v765, 24
        %v1277 = vpop.permute.xlu0 %1276
        %1278 = vrot.lane.b32.xlu0 %v766, 24
        %v1279 = vpop.permute.xlu0 %1278
        %1280 = vrot.lane.b32.xlu0 %v767, 24
        %v1281 = vpop.permute.xlu0 %1280
        %1282 = vrot.lane.b32.xlu0 %v768, 24
        %v1283 = vpop.permute.xlu0 %1282
        %1284 = vrot.lane.b32.xlu0 %v769, 24
        %v1285 = vpop.permute.xlu0 %1284
        %1286 = vrot.lane.b32.xlu0 %v770, 24
        %v1287 = vpop.permute.xlu0 %1286
        %1288 = vrot.lane.b32.xlu0 %v771, 24
        %v1289 = vpop.permute.xlu0 %1288
        %1290 = vrot.lane.b32.xlu0 %v772, 24
        %v1291 = vpop.permute.xlu0 %1290
        %1292 = vrot.lane.b32.xlu0 %v773, 24
        %v1293 = vpop.permute.xlu0 %1292
        %1294 = vrot.lane.b32.xlu0 %v774, 24
        %v1295 = vpop.permute.xlu0 %1294
        %1296 = vrot.lane.b32.xlu0 %v775, 24
        %v1297 = vpop.permute.xlu0 %1296
        %1298 = vrot.lane.b32.xlu0 %v776, 24
        %v1299 = vpop.permute.xlu0 %1298
        %1300 = vrot.lane.b32.xlu0 %v777, 24
        %v1301 = vpop.permute.xlu0 %1300
        %1302 = vrot.lane.b32.xlu0 %v778, 24
        %v1303 = vpop.permute.xlu0 %1302
        %1304 = vrot.lane.b32.xlu0 %v779, 24
        %v1305 = vpop.permute.xlu0 %1304
        %1306 = vrot.lane.b32.xlu0 %v780, 24
        %v1307 = vpop.permute.xlu0 %1306
        %1308 = vrot.lane.b32.xlu0 %v781, 24
        %v1309 = vpop.permute.xlu0 %1308
        %1310 = vrot.lane.b32.xlu0 %v782, 24
        %v1311 = vpop.permute.xlu0 %1310
        %1312 = vrot.lane.b32.xlu0 %v783, 24
        %v1313 = vpop.permute.xlu0 %1312
        %1314 = vrot.lane.b32.xlu0 %v784, 24
        %v1315 = vpop.permute.xlu0 %1314
        %1316 = vrot.lane.b32.xlu0 %v785, 24
        %v1317 = vpop.permute.xlu0 %1316
        %1318 = vrot.lane.b32.xlu0 %v786, 24
        %v1319 = vpop.permute.xlu0 %1318
        %1320 = vrot.lane.b32.xlu0 %v787, 24
        %v1321 = vpop.permute.xlu0 %1320
        %1322 = vrot.lane.b32.xlu0 %v788, 24
        %v1323 = vpop.permute.xlu0 %1322
        %1324 = vrot.lane.b32.xlu0 %v789, 24
        %v1325 = vpop.permute.xlu0 %1324
        %1326 = vrot.lane.b32.xlu0 %v790, 24
        %v1327 = vpop.permute.xlu0 %1326
        %1328 = vrot.lane.b32.xlu0 %v1234, 24
        %v1329 = vpop.permute.xlu0 %1328
        %1330 = vrot.lane.b32.xlu0 %v1235, 24
        %v1331 = vpop.permute.xlu0 %1330
        %vm1364 = vcmask 261312
        %1365 = vst.msk [vmem:[#allocation2] sm:$0xff] %vm1364, %v1269
        %1366 = vst.msk [vmem:[#allocation2 + $0x8] sm:$0xff] %vm1364, %v1271
        %1367 = vst.msk [vmem:[#allocation2 + $0x10] sm:$0xff] %vm1364, %v1273
        %1368 = vst.msk [vmem:[#allocation2 + $0x18] sm:$0xff] %vm1364, %v1275
        %1369 = vst.msk [vmem:[#allocation2 + $0x20] sm:$0xff] %vm1364, %v1277
        %1370 = vst.msk [vmem:[#allocation2 + $0x28] sm:$0xff] %vm1364, %v1279
        %1371 = vst.msk [vmem:[#allocation2 + $0x30] sm:$0xff] %vm1364, %v1281
        %1372 = vst.msk [vmem:[#allocation2 + $0x38] sm:$0xff] %vm1364, %v1283
        %1373 = vst.msk [vmem:[#allocation2 + $0x40] sm:$0xff] %vm1364, %v1285
        %1374 = vst.msk [vmem:[#allocation2 + $0x48] sm:$0xff] %vm1364, %v1287
        %1375 = vst.msk [vmem:[#allocation2 + $0x50] sm:$0xff] %vm1364, %v1289
        %1376 = vst.msk [vmem:[#allocation2 + $0x58] sm:$0xff] %vm1364, %v1291
        %1377 = vst.msk [vmem:[#allocation2 + $0x60] sm:$0xff] %vm1364, %v1293
        %1378 = vst.msk [vmem:[#allocation2 + $0x68] sm:$0xff] %vm1364, %v1295
        %1379 = vst.msk [vmem:[#allocation2 + $0x70] sm:$0xff] %vm1364, %v1297
        %1380 = vst.msk [vmem:[#allocation2 + $0x78] sm:$0xff] %vm1364, %v1299
        %1381 = vst.msk [vmem:[#allocation2 + $0x80] sm:$0xff] %vm1364, %v1301
        %1382 = vst.msk [vmem:[#allocation2 + $0x88] sm:$0xff] %vm1364, %v1303
        %1383 = vst.msk [vmem:[#allocation2 + $0x90] sm:$0xff] %vm1364, %v1305
        %1384 = vst.msk [vmem:[#allocation2 + $0x98] sm:$0xff] %vm1364, %v1307
        %1385 = vst.msk [vmem:[#allocation2 + $0xa0] sm:$0xff] %vm1364, %v1309
        %1386 = vst.msk [vmem:[#allocation2 + $0xa8] sm:$0xff] %vm1364, %v1311
        %1387 = vst.msk [vmem:[#allocation2 + $0xb0] sm:$0xff] %vm1364, %v1313
        %1388 = vst.msk [vmem:[#allocation2 + $0xb8] sm:$0xff] %vm1364, %v1315
        %1389 = vst.msk [vmem:[#allocation2 + $0xc0] sm:$0xff] %vm1364, %v1317
        %1390 = vst.msk [vmem:[#allocation2 + $0xc8] sm:$0xff] %vm1364, %v1319
        %1391 = vst.msk [vmem:[#allocation2 + $0xd0] sm:$0xff] %vm1364, %v1321
        %1392 = vst.msk [vmem:[#allocation2 + $0xd8] sm:$0xff] %vm1364, %v1323
        %1393 = vst.msk [vmem:[#allocation2 + $0xe0] sm:$0xff] %vm1364, %v1325
        %1394 = vst.msk [vmem:[#allocation2 + $0xe8] sm:$0xff] %vm1364, %v1327
        %1395 = vst.msk [vmem:[#allocation2 + $0xf0] sm:$0xff] %vm1364, %v1329
        %1396 = vst.msk [vmem:[#allocation2 + $0xf8] sm:$0xff] %vm1364, %v1331
        %1399 = vrot.lane.b32.xlu0 %v662, 32
        %v1400 = vpop.permute.xlu0 %1399
        %1401 = vrot.lane.b32.xlu0 %v663, 32
        %v1402 = vpop.permute.xlu0 %1401
        %1403 = vrot.lane.b32.xlu0 %v664, 32
        %v1404 = vpop.permute.xlu0 %1403
        %1405 = vrot.lane.b32.xlu0 %v665, 32
        %v1406 = vpop.permute.xlu0 %1405
        %1407 = vrot.lane.b32.xlu0 %v666, 32
        %v1408 = vpop.permute.xlu0 %1407
        %1409 = vrot.lane.b32.xlu0 %v667, 32
        %v1410 = vpop.permute.xlu0 %1409
        %1411 = vrot.lane.b32.xlu0 %v668, 32
        %v1412 = vpop.permute.xlu0 %1411
        %1413 = vrot.lane.b32.xlu0 %v669, 32
        %v1414 = vpop.permute.xlu0 %1413
        %1415 = vrot.lane.b32.xlu0 %v670, 32
        %v1416 = vpop.permute.xlu0 %1415
        %1417 = vrot.lane.b32.xlu0 %v671, 32
        %v1418 = vpop.permute.xlu0 %1417
        %1419 = vrot.lane.b32.xlu0 %v672, 32
        %v1420 = vpop.permute.xlu0 %1419
        %1421 = vrot.lane.b32.xlu0 %v673, 32
        %v1422 = vpop.permute.xlu0 %1421
        %1423 = vrot.lane.b32.xlu0 %v674, 32
        %v1424 = vpop.permute.xlu0 %1423
        %1425 = vrot.lane.b32.xlu0 %v675, 32
        %v1426 = vpop.permute.xlu0 %1425
        %1427 = vrot.lane.b32.xlu0 %v676, 32
        %v1428 = vpop.permute.xlu0 %1427
        %1429 = vrot.lane.b32.xlu0 %v677, 32
        %v1430 = vpop.permute.xlu0 %1429
        %1431 = vrot.lane.b32.xlu0 %v678, 32
        %v1432 = vpop.permute.xlu0 %1431
        %1433 = vrot.lane.b32.xlu0 %v679, 32
        %v1434 = vpop.permute.xlu0 %1433
        %1435 = vrot.lane.b32.xlu0 %v680, 32
        %v1436 = vpop.permute.xlu0 %1435
        %1437 = vrot.lane.b32.xlu0 %v681, 32
        %v1438 = vpop.permute.xlu0 %1437
        %1439 = vrot.lane.b32.xlu0 %v682, 32
        %v1440 = vpop.permute.xlu0 %1439
        %1441 = vrot.lane.b32.xlu0 %v683, 32
        %v1442 = vpop.permute.xlu0 %1441
        %1443 = vrot.lane.b32.xlu0 %v684, 32
        %v1444 = vpop.permute.xlu0 %1443
        %1445 = vrot.lane.b32.xlu0 %v685, 32
        %v1446 = vpop.permute.xlu0 %1445
        %1447 = vrot.lane.b32.xlu0 %v686, 32
        %v1448 = vpop.permute.xlu0 %1447
        %1449 = vrot.lane.b32.xlu0 %v687, 32
        %v1450 = vpop.permute.xlu0 %1449
        %1451 = vrot.lane.b32.xlu0 %v688, 32
        %v1452 = vpop.permute.xlu0 %1451
        %1453 = vrot.lane.b32.xlu0 %v689, 32
        %v1454 = vpop.permute.xlu0 %1453
        %1455 = vrot.lane.b32.xlu0 %v690, 32
        %v1456 = vpop.permute.xlu0 %1455
        %1457 = vrot.lane.b32.xlu0 %v691, 32
        %v1458 = vpop.permute.xlu0 %1457
        %1459 = vrot.lane.b32.xlu0 %v692, 32
        %v1460 = vpop.permute.xlu0 %1459
        %1461 = vrot.lane.b32.xlu0 %v693, 32
        %v1462 = vpop.permute.xlu0 %1461
        %vm1495 = vcmask 326912
        %1496 = vst.msk [vmem:[#allocation2] sm:$0xff] %vm1495, %v1400
        %1497 = vst.msk [vmem:[#allocation2 + $0x8] sm:$0xff] %vm1495, %v1402
        %1498 = vst.msk [vmem:[#allocation2 + $0x10] sm:$0xff] %vm1495, %v1404
        %1499 = vst.msk [vmem:[#allocation2 + $0x18] sm:$0xff] %vm1495, %v1406
        %1500 = vst.msk [vmem:[#allocation2 + $0x20] sm:$0xff] %vm1495, %v1408
        %1501 = vst.msk [vmem:[#allocation2 + $0x28] sm:$0xff] %vm1495, %v1410
        %1502 = vst.msk [vmem:[#allocation2 + $0x30] sm:$0xff] %vm1495, %v1412
        %1503 = vst.msk [vmem:[#allocation2 + $0x38] sm:$0xff] %vm1495, %v1414
        %1504 = vst.msk [vmem:[#allocation2 + $0x40] sm:$0xff] %vm1495, %v1416
        %1505 = vst.msk [vmem:[#allocation2 + $0x48] sm:$0xff] %vm1495, %v1418
        %1506 = vst.msk [vmem:[#allocation2 + $0x50] sm:$0xff] %vm1495, %v1420
        %1507 = vst.msk [vmem:[#allocation2 + $0x58] sm:$0xff] %vm1495, %v1422
        %1508 = vst.msk [vmem:[#allocation2 + $0x60] sm:$0xff] %vm1495, %v1424
        %1509 = vst.msk [vmem:[#allocation2 + $0x68] sm:$0xff] %vm1495, %v1426
        %1510 = vst.msk [vmem:[#allocation2 + $0x70] sm:$0xff] %vm1495, %v1428
        %1511 = vst.msk [vmem:[#allocation2 + $0x78] sm:$0xff] %vm1495, %v1430
        %1512 = vst.msk [vmem:[#allocation2 + $0x80] sm:$0xff] %vm1495, %v1432
        %1513 = vst.msk [vmem:[#allocation2 + $0x88] sm:$0xff] %vm1495, %v1434
        %1514 = vst.msk [vmem:[#allocation2 + $0x90] sm:$0xff] %vm1495, %v1436
        %1515 = vst.msk [vmem:[#allocation2 + $0x98] sm:$0xff] %vm1495, %v1438
        %1516 = vst.msk [vmem:[#allocation2 + $0xa0] sm:$0xff] %vm1495, %v1440
        %1517 = vst.msk [vmem:[#allocation2 + $0xa8] sm:$0xff] %vm1495, %v1442
        %1518 = vst.msk [vmem:[#allocation2 + $0xb0] sm:$0xff] %vm1495, %v1444
        %1519 = vst.msk [vmem:[#allocation2 + $0xb8] sm:$0xff] %vm1495, %v1446
        %1520 = vst.msk [vmem:[#allocation2 + $0xc0] sm:$0xff] %vm1495, %v1448
        %1521 = vst.msk [vmem:[#allocation2 + $0xc8] sm:$0xff] %vm1495, %v1450
        %1522 = vst.msk [vmem:[#allocation2 + $0xd0] sm:$0xff] %vm1495, %v1452
        %1523 = vst.msk [vmem:[#allocation2 + $0xd8] sm:$0xff] %vm1495, %v1454
        %1524 = vst.msk [vmem:[#allocation2 + $0xe0] sm:$0xff] %vm1495, %v1456
        %1525 = vst.msk [vmem:[#allocation2 + $0xe8] sm:$0xff] %vm1495, %v1458
        %1526 = vst.msk [vmem:[#allocation2 + $0xf0] sm:$0xff] %vm1495, %v1460
        %1527 = vst.msk [vmem:[#allocation2 + $0xf8] sm:$0xff] %vm1495, %v1462
        %v1528 = vrot.slane %v693, 1
        %v1529 = vsel %vm1014, %v1013, %v1528
        %v1530 = vsel %vm1014, %v1528, %v983
        %v1531 = vsel %vm981, %v1529, 0.0
        %v1532 = vsel %vm982, %v1530, 0.0
        %1535 = vrot.lane.b32.xlu0 %v1045, 40
        %v1536 = vpop.permute.xlu0 %1535
        %1537 = vrot.lane.b32.xlu0 %v1046, 40
        %v1538 = vpop.permute.xlu0 %1537
        %1539 = vrot.lane.b32.xlu0 %v1047, 40
        %v1540 = vpop.permute.xlu0 %1539
        %1541 = vrot.lane.b32.xlu0 %v1048, 40
        %v1542 = vpop.permute.xlu0 %1541
        %1543 = vrot.lane.b32.xlu0 %v1049, 40
        %v1544 = vpop.permute.xlu0 %1543
        %1545 = vrot.lane.b32.xlu0 %v1050, 40
        %v1546 = vpop.permute.xlu0 %1545
        %1547 = vrot.lane.b32.xlu0 %v1051, 40
        %v1548 = vpop.permute.xlu0 %1547
        %1549 = vrot.lane.b32.xlu0 %v1052, 40
        %v1550 = vpop.permute.xlu0 %1549
        %1551 = vrot.lane.b32.xlu0 %v1053, 40
        %v1552 = vpop.permute.xlu0 %1551
        %1553 = vrot.lane.b32.xlu0 %v1054, 40
        %v1554 = vpop.permute.xlu0 %1553
        %1555 = vrot.lane.b32.xlu0 %v1055, 40
        %v1556 = vpop.permute.xlu0 %1555
        %1557 = vrot.lane.b32.xlu0 %v1056, 40
        %v1558 = vpop.permute.xlu0 %1557
        %1559 = vrot.lane.b32.xlu0 %v1057, 40
        %v1560 = vpop.permute.xlu0 %1559
        %1561 = vrot.lane.b32.xlu0 %v1058, 40
        %v1562 = vpop.permute.xlu0 %1561
        %1563 = vrot.lane.b32.xlu0 %v1059, 40
        %v1564 = vpop.permute.xlu0 %1563
        %1565 = vrot.lane.b32.xlu0 %v1060, 40
        %v1566 = vpop.permute.xlu0 %1565
        %1567 = vrot.lane.b32.xlu0 %v1061, 40
        %v1568 = vpop.permute.xlu0 %1567
        %1569 = vrot.lane.b32.xlu0 %v1062, 40
        %v1570 = vpop.permute.xlu0 %1569
        %1571 = vrot.lane.b32.xlu0 %v1063, 40
        %v1572 = vpop.permute.xlu0 %1571
        %1573 = vrot.lane.b32.xlu0 %v1064, 40
        %v1574 = vpop.permute.xlu0 %1573
        %1575 = vrot.lane.b32.xlu0 %v1065, 40
        %v1576 = vpop.permute.xlu0 %1575
        %1577 = vrot.lane.b32.xlu0 %v1066, 40
        %v1578 = vpop.permute.xlu0 %1577
        %1579 = vrot.lane.b32.xlu0 %v1067, 40
        %v1580 = vpop.permute.xlu0 %1579
        %1581 = vrot.lane.b32.xlu0 %v1068, 40
        %v1582 = vpop.permute.xlu0 %1581
        %1583 = vrot.lane.b32.xlu0 %v1069, 40
        %v1584 = vpop.permute.xlu0 %1583
        %1585 = vrot.lane.b32.xlu0 %v1070, 40
        %v1586 = vpop.permute.xlu0 %1585
        %1587 = vrot.lane.b32.xlu0 %v1071, 40
        %v1588 = vpop.permute.xlu0 %1587
        %1589 = vrot.lane.b32.xlu0 %v1072, 40
        %v1590 = vpop.permute.xlu0 %1589
        %1591 = vrot.lane.b32.xlu0 %v1073, 40
        %v1592 = vpop.permute.xlu0 %1591
        %1593 = vrot.lane.b32.xlu0 %v1074, 40
        %v1594 = vpop.permute.xlu0 %1593
        %1595 = vrot.lane.b32.xlu0 %v1531, 40
        %v1596 = vpop.permute.xlu0 %1595
        %1597 = vrot.lane.b32.xlu0 %v1532, 40
        %v1598 = vpop.permute.xlu0 %1597
        %vm1631 = vcmask 392512
        %1632 = vst.msk [vmem:[#allocation2] sm:$0xff] %vm1631, %v1536
        %1633 = vst.msk [vmem:[#allocation2 + $0x8] sm:$0xff] %vm1631, %v1538
        %1634 = vst.msk [vmem:[#allocation2 + $0x10] sm:$0xff] %vm1631, %v1540
        %1635 = vst.msk [vmem:[#allocation2 + $0x18] sm:$0xff] %vm1631, %v1542
        %1636 = vst.msk [vmem:[#allocation2 + $0x20] sm:$0xff] %vm1631, %v1544
        %1637 = vst.msk [vmem:[#allocation2 + $0x28] sm:$0xff] %vm1631, %v1546
        %1638 = vst.msk [vmem:[#allocation2 + $0x30] sm:$0xff] %vm1631, %v1548
        %1639 = vst.msk [vmem:[#allocation2 + $0x38] sm:$0xff] %vm1631, %v1550
        %1640 = vst.msk [vmem:[#allocation2 + $0x40] sm:$0xff] %vm1631, %v1552
        %1641 = vst.msk [vmem:[#allocation2 + $0x48] sm:$0xff] %vm1631, %v1554
        %1642 = vst.msk [vmem:[#allocation2 + $0x50] sm:$0xff] %vm1631, %v1556
        %1643 = vst.msk [vmem:[#allocation2 + $0x58] sm:$0xff] %vm1631, %v1558
        %1644 = vst.msk [vmem:[#allocation2 + $0x60] sm:$0xff] %vm1631, %v1560
        %1645 = vst.msk [vmem:[#allocation2 + $0x68] sm:$0xff] %vm1631, %v1562
        %1646 = vst.msk [vmem:[#allocation2 + $0x70] sm:$0xff] %vm1631, %v1564
        %1647 = vst.msk [vmem:[#allocation2 + $0x78] sm:$0xff] %vm1631, %v1566
        %1648 = vst.msk [vmem:[#allocation2 + $0x80] sm:$0xff] %vm1631, %v1568
        %1649 = vst.msk [vmem:[#allocation2 + $0x88] sm:$0xff] %vm1631, %v1570
        %1650 = vst.msk [vmem:[#allocation2 + $0x90] sm:$0xff] %vm1631, %v1572
        %1651 = vst.msk [vmem:[#allocation2 + $0x98] sm:$0xff] %vm1631, %v1574
        %1652 = vst.msk [vmem:[#allocation2 + $0xa0] sm:$0xff] %vm1631, %v1576
        %1653 = vst.msk [vmem:[#allocation2 + $0xa8] sm:$0xff] %vm1631, %v1578
        %1654 = vst.msk [vmem:[#allocation2 + $0xb0] sm:$0xff] %vm1631, %v1580
        %1655 = vst.msk [vmem:[#allocation2 + $0xb8] sm:$0xff] %vm1631, %v1582
        %1656 = vst.msk [vmem:[#allocation2 + $0xc0] sm:$0xff] %vm1631, %v1584
        %1657 = vst.msk [vmem:[#allocation2 + $0xc8] sm:$0xff] %vm1631, %v1586
        %1658 = vst.msk [vmem:[#allocation2 + $0xd0] sm:$0xff] %vm1631, %v1588
        %1659 = vst.msk [vmem:[#allocation2 + $0xd8] sm:$0xff] %vm1631, %v1590
        %1660 = vst.msk [vmem:[#allocation2 + $0xe0] sm:$0xff] %vm1631, %v1592
        %1661 = vst.msk [vmem:[#allocation2 + $0xe8] sm:$0xff] %vm1631, %v1594
        %1662 = vst.msk [vmem:[#allocation2 + $0xf0] sm:$0xff] %vm1631, %v1596
        %1663 = vst.msk [vmem:[#allocation2 + $0xf8] sm:$0xff] %vm1631, %v1598
        %1664 = vrot.lane.b32.xlu0 %v763, 48
        %v1665 = vpop.permute.xlu0 %1664
        %1666 = vrot.lane.b32.xlu0 %v764, 48
        %v1667 = vpop.permute.xlu0 %1666
        %1668 = vrot.lane.b32.xlu0 %v765, 48
        %v1669 = vpop.permute.xlu0 %1668
        %1670 = vrot.lane.b32.xlu0 %v766, 48
        %v1671 = vpop.permute.xlu0 %1670
        %1672 = vrot.lane.b32.xlu0 %v767, 48
        %v1673 = vpop.permute.xlu0 %1672
        %1674 = vrot.lane.b32.xlu0 %v768, 48
        %v1675 = vpop.permute.xlu0 %1674
        %1676 = vrot.lane.b32.xlu0 %v769, 48
        %v1677 = vpop.permute.xlu0 %1676
        %1678 = vrot.lane.b32.xlu0 %v770, 48
        %v1679 = vpop.permute.xlu0 %1678
        %1680 = vrot.lane.b32.xlu0 %v771, 48
        %v1681 = vpop.permute.xlu0 %1680
        %1682 = vrot.lane.b32.xlu0 %v772, 48
        %v1683 = vpop.permute.xlu0 %1682
        %1684 = vrot.lane.b32.xlu0 %v773, 48
        %v1685 = vpop.permute.xlu0 %1684
        %1686 = vrot.lane.b32.xlu0 %v774, 48
        %v1687 = vpop.permute.xlu0 %1686
        %1688 = vrot.lane.b32.xlu0 %v775, 48
        %v1689 = vpop.permute.xlu0 %1688
        %1690 = vrot.lane.b32.xlu0 %v776, 48
        %v1691 = vpop.permute.xlu0 %1690
        %1692 = vrot.lane.b32.xlu0 %v777, 48
        %v1693 = vpop.permute.xlu0 %1692
        %1694 = vrot.lane.b32.xlu0 %v778, 48
        %v1695 = vpop.permute.xlu0 %1694
        %1696 = vrot.lane.b32.xlu0 %v779, 48
        %v1697 = vpop.permute.xlu0 %1696
        %1698 = vrot.lane.b32.xlu0 %v780, 48
        %v1699 = vpop.permute.xlu0 %1698
        %1700 = vrot.lane.b32.xlu0 %v781, 48
        %v1701 = vpop.permute.xlu0 %1700
        %1702 = vrot.lane.b32.xlu0 %v782, 48
        %v1703 = vpop.permute.xlu0 %1702
        %1704 = vrot.lane.b32.xlu0 %v783, 48
        %v1705 = vpop.permute.xlu0 %1704
        %1706 = vrot.lane.b32.xlu0 %v784, 48
        %v1707 = vpop.permute.xlu0 %1706
        %1708 = vrot.lane.b32.xlu0 %v785, 48
        %v1709 = vpop.permute.xlu0 %1708
        %1710 = vrot.lane.b32.xlu0 %v786, 48
        %v1711 = vpop.permute.xlu0 %1710
        %1712 = vrot.lane.b32.xlu0 %v787, 48
        %v1713 = vpop.permute.xlu0 %1712
        %1714 = vrot.lane.b32.xlu0 %v788, 48
        %v1715 = vpop.permute.xlu0 %1714
        %1716 = vrot.lane.b32.xlu0 %v789, 48
        %v1717 = vpop.permute.xlu0 %1716
        %1718 = vrot.lane.b32.xlu0 %v790, 48
        %v1719 = vpop.permute.xlu0 %1718
        %1720 = vrot.lane.b32.xlu0 %v1234, 48
        %v1721 = vpop.permute.xlu0 %1720
        %1722 = vrot.lane.b32.xlu0 %v1235, 48
        %v1723 = vpop.permute.xlu0 %1722
        %1724 = vrot.lane.b32.xlu0 0.0, 48
        %v1725 = vpop.permute.xlu0 %1724
        %vm1757 = vcmask 458112
        %1758 = vst.msk [vmem:[#allocation2] sm:$0xff] %vm1757, %v1665
        %1759 = vst.msk [vmem:[#allocation2 + $0x8] sm:$0xff] %vm1757, %v1667
        %1760 = vst.msk [vmem:[#allocation2 + $0x10] sm:$0xff] %vm1757, %v1669
        %1761 = vst.msk [vmem:[#allocation2 + $0x18] sm:$0xff] %vm1757, %v1671
        %1762 = vst.msk [vmem:[#allocation2 + $0x20] sm:$0xff] %vm1757, %v1673
        %1763 = vst.msk [vmem:[#allocation2 + $0x28] sm:$0xff] %vm1757, %v1675
        %1764 = vst.msk [vmem:[#allocation2 + $0x30] sm:$0xff] %vm1757, %v1677
        %1765 = vst.msk [vmem:[#allocation2 + $0x38] sm:$0xff] %vm1757, %v1679
        %1766 = vst.msk [vmem:[#allocation2 + $0x40] sm:$0xff] %vm1757, %v1681
        %1767 = vst.msk [vmem:[#allocation2 + $0x48] sm:$0xff] %vm1757, %v1683
        %1768 = vst.msk [vmem:[#allocation2 + $0x50] sm:$0xff] %vm1757, %v1685
        %1769 = vst.msk [vmem:[#allocation2 + $0x58] sm:$0xff] %vm1757, %v1687
        %1770 = vst.msk [vmem:[#allocation2 + $0x60] sm:$0xff] %vm1757, %v1689
        %1771 = vst.msk [vmem:[#allocation2 + $0x68] sm:$0xff] %vm1757, %v1691
        %1772 = vst.msk [vmem:[#allocation2 + $0x70] sm:$0xff] %vm1757, %v1693
        %1773 = vst.msk [vmem:[#allocation2 + $0x78] sm:$0xff] %vm1757, %v1695
        %1774 = vst.msk [vmem:[#allocation2 + $0x80] sm:$0xff] %vm1757, %v1697
        %1775 = vst.msk [vmem:[#allocation2 + $0x88] sm:$0xff] %vm1757, %v1699
        %1776 = vst.msk [vmem:[#allocation2 + $0x90] sm:$0xff] %vm1757, %v1701
        %1777 = vst.msk [vmem:[#allocation2 + $0x98] sm:$0xff] %vm1757, %v1703
        %1778 = vst.msk [vmem:[#allocation2 + $0xa0] sm:$0xff] %vm1757, %v1705
        %1779 = vst.msk [vmem:[#allocation2 + $0xa8] sm:$0xff] %vm1757, %v1707
        %1780 = vst.msk [vmem:[#allocation2 + $0xb0] sm:$0xff] %vm1757, %v1709
        %1781 = vst.msk [vmem:[#allocation2 + $0xb8] sm:$0xff] %vm1757, %v1711
        %1782 = vst.msk [vmem:[#allocation2 + $0xc0] sm:$0xff] %vm1757, %v1713
        %1783 = vst.msk [vmem:[#allocation2 + $0xc8] sm:$0xff] %vm1757, %v1715
        %1784 = vst.msk [vmem:[#allocation2 + $0xd0] sm:$0xff] %vm1757, %v1717
        %1785 = vst.msk [vmem:[#allocation2 + $0xd8] sm:$0xff] %vm1757, %v1719
        %1786 = vst.msk [vmem:[#allocation2 + $0xe0] sm:$0xff] %vm1757, %v1721
        %1787 = vst.msk [vmem:[#allocation2 + $0xe8] sm:$0xff] %vm1757, %v1723
        %1788 = vst.msk [vmem:[#allocation2 + $0xf0] sm:$0xff] %vm1757, %v1725
        %1789 = vst.msk [vmem:[#allocation2 + $0xf8] sm:$0xff] %vm1757, %v1725
        %1790 = vrot.lane.b32.xlu0 %v664, 56
        %v1791 = vpop.permute.xlu0 %1790
        %1792 = vrot.lane.b32.xlu0 %v665, 56
        %v1793 = vpop.permute.xlu0 %1792
        %1794 = vrot.lane.b32.xlu0 %v666, 56
        %v1795 = vpop.permute.xlu0 %1794
        %1796 = vrot.lane.b32.xlu0 %v667, 56
        %v1797 = vpop.permute.xlu0 %1796
        %1798 = vrot.lane.b32.xlu0 %v668, 56
        %v1799 = vpop.permute.xlu0 %1798
        %1800 = vrot.lane.b32.xlu0 %v669, 56
        %v1801 = vpop.permute.xlu0 %1800
        %1802 = vrot.lane.b32.xlu0 %v670, 56
        %v1803 = vpop.permute.xlu0 %1802
        %1804 = vrot.lane.b32.xlu0 %v671, 56
        %v1805 = vpop.permute.xlu0 %1804
        %1806 = vrot.lane.b32.xlu0 %v672, 56
        %v1807 = vpop.permute.xlu0 %1806
        %1808 = vrot.lane.b32.xlu0 %v673, 56
        %v1809 = vpop.permute.xlu0 %1808
        %1810 = vrot.lane.b32.xlu0 %v674, 56
        %v1811 = vpop.permute.xlu0 %1810
        %1812 = vrot.lane.b32.xlu0 %v675, 56
        %v1813 = vpop.permute.xlu0 %1812
        %1814 = vrot.lane.b32.xlu0 %v676, 56
        %v1815 = vpop.permute.xlu0 %1814
        %1816 = vrot.lane.b32.xlu0 %v677, 56
        %v1817 = vpop.permute.xlu0 %1816
        %1818 = vrot.lane.b32.xlu0 %v678, 56
        %v1819 = vpop.permute.xlu0 %1818
        %1820 = vrot.lane.b32.xlu0 %v679, 56
        %v1821 = vpop.permute.xlu0 %1820
        %1822 = vrot.lane.b32.xlu0 %v680, 56
        %v1823 = vpop.permute.xlu0 %1822
        %1824 = vrot.lane.b32.xlu0 %v681, 56
        %v1825 = vpop.permute.xlu0 %1824
        %1826 = vrot.lane.b32.xlu0 %v682, 56
        %v1827 = vpop.permute.xlu0 %1826
        %1828 = vrot.lane.b32.xlu0 %v683, 56
        %v1829 = vpop.permute.xlu0 %1828
        %1830 = vrot.lane.b32.xlu0 %v684, 56
        %v1831 = vpop.permute.xlu0 %1830
        %1832 = vrot.lane.b32.xlu0 %v685, 56
        %v1833 = vpop.permute.xlu0 %1832
        %1834 = vrot.lane.b32.xlu0 %v686, 56
        %v1835 = vpop.permute.xlu0 %1834
        %1836 = vrot.lane.b32.xlu0 %v687, 56
        %v1837 = vpop.permute.xlu0 %1836
        %1838 = vrot.lane.b32.xlu0 %v688, 56
        %v1839 = vpop.permute.xlu0 %1838
        %1840 = vrot.lane.b32.xlu0 %v689, 56
        %v1841 = vpop.permute.xlu0 %1840
        %1842 = vrot.lane.b32.xlu0 %v690, 56
        %v1843 = vpop.permute.xlu0 %1842
        %1844 = vrot.lane.b32.xlu0 %v691, 56
        %v1845 = vpop.permute.xlu0 %1844
        %1846 = vrot.lane.b32.xlu0 %v692, 56
        %v1847 = vpop.permute.xlu0 %1846
        %1848 = vrot.lane.b32.xlu0 %v693, 56
        %v1849 = vpop.permute.xlu0 %1848
        %1850 = vrot.lane.b32.xlu0 0.0, 56
        %v1851 = vpop.permute.xlu0 %1850
        %vm1883 = vcmask 523712
        %1884 = vst.msk [vmem:[#allocation2] sm:$0xff] %vm1883, %v1791
        %1885 = vst.msk [vmem:[#allocation2 + $0x8] sm:$0xff] %vm1883, %v1793
        %1886 = vst.msk [vmem:[#allocation2 + $0x10] sm:$0xff] %vm1883, %v1795
        %1887 = vst.msk [vmem:[#allocation2 + $0x18] sm:$0xff] %vm1883, %v1797
        %1888 = vst.msk [vmem:[#allocation2 + $0x20] sm:$0xff] %vm1883, %v1799
        %1889 = vst.msk [vmem:[#allocation2 + $0x28] sm:$0xff] %vm1883, %v1801
        %1890 = vst.msk [vmem:[#allocation2 + $0x30] sm:$0xff] %vm1883, %v1803
        %1891 = vst.msk [vmem:[#allocation2 + $0x38] sm:$0xff] %vm1883, %v1805
        %1892 = vst.msk [vmem:[#allocation2 + $0x40] sm:$0xff] %vm1883, %v1807
        %1893 = vst.msk [vmem:[#allocation2 + $0x48] sm:$0xff] %vm1883, %v1809
        %1894 = vst.msk [vmem:[#allocation2 + $0x50] sm:$0xff] %vm1883, %v1811
        %1895 = vst.msk [vmem:[#allocation2 + $0x58] sm:$0xff] %vm1883, %v1813
        %1896 = vst.msk [vmem:[#allocation2 + $0x60] sm:$0xff] %vm1883, %v1815
        %1897 = vst.msk [vmem:[#allocation2 + $0x68] sm:$0xff] %vm1883, %v1817
        %1898 = vst.msk [vmem:[#allocation2 + $0x70] sm:$0xff] %vm1883, %v1819
        %1899 = vst.msk [vmem:[#allocation2 + $0x78] sm:$0xff] %vm1883, %v1821
        %1900 = vst.msk [vmem:[#allocation2 + $0x80] sm:$0xff] %vm1883, %v1823
        %1901 = vst.msk [vmem:[#allocation2 + $0x88] sm:$0xff] %vm1883, %v1825
        %1902 = vst.msk [vmem:[#allocation2 + $0x90] sm:$0xff] %vm1883, %v1827
        %1903 = vst.msk [vmem:[#allocation2 + $0x98] sm:$0xff] %vm1883, %v1829
        %1904 = vst.msk [vmem:[#allocation2 + $0xa0] sm:$0xff] %vm1883, %v1831
        %1905 = vst.msk [vmem:[#allocation2 + $0xa8] sm:$0xff] %vm1883, %v1833
        %1906 = vst.msk [vmem:[#allocation2 + $0xb0] sm:$0xff] %vm1883, %v1835
        %1907 = vst.msk [vmem:[#allocation2 + $0xb8] sm:$0xff] %vm1883, %v1837
        %1908 = vst.msk [vmem:[#allocation2 + $0xc0] sm:$0xff] %vm1883, %v1839
        %1909 = vst.msk [vmem:[#allocation2 + $0xc8] sm:$0xff] %vm1883, %v1841
        %1910 = vst.msk [vmem:[#allocation2 + $0xd0] sm:$0xff] %vm1883, %v1843
        %1911 = vst.msk [vmem:[#allocation2 + $0xd8] sm:$0xff] %vm1883, %v1845
        %1912 = vst.msk [vmem:[#allocation2 + $0xe0] sm:$0xff] %vm1883, %v1847
        %1913 = vst.msk [vmem:[#allocation2 + $0xe8] sm:$0xff] %vm1883, %v1849
        %1914 = vst.msk [vmem:[#allocation2 + $0xf0] sm:$0xff] %vm1883, %v1851
        %1915 = vst.msk [vmem:[#allocation2 + $0xf8] sm:$0xff] %vm1883, %v1851
        %1916 = vrot.lane.b32.xlu0 %v1047, 64
        %v1917 = vpop.permute.xlu0 %1916
        %1918 = vrot.lane.b32.xlu0 %v1048, 64
        %v1919 = vpop.permute.xlu0 %1918
        %1920 = vrot.lane.b32.xlu0 %v1049, 64
        %v1921 = vpop.permute.xlu0 %1920
        %1922 = vrot.lane.b32.xlu0 %v1050, 64
        %v1923 = vpop.permute.xlu0 %1922
        %1924 = vrot.lane.b32.xlu0 %v1051, 64
        %v1925 = vpop.permute.xlu0 %1924
        %1926 = vrot.lane.b32.xlu0 %v1052, 64
        %v1927 = vpop.permute.xlu0 %1926
        %1928 = vrot.lane.b32.xlu0 %v1053, 64
        %v1929 = vpop.permute.xlu0 %1928
        %1930 = vrot.lane.b32.xlu0 %v1054, 64
        %v1931 = vpop.permute.xlu0 %1930
        %1932 = vrot.lane.b32.xlu0 %v1055, 64
        %v1933 = vpop.permute.xlu0 %1932
        %1934 = vrot.lane.b32.xlu0 %v1056, 64
        %v1935 = vpop.permute.xlu0 %1934
        %1936 = vrot.lane.b32.xlu0 %v1057, 64
        %v1937 = vpop.permute.xlu0 %1936
        %1938 = vrot.lane.b32.xlu0 %v1058, 64
        %v1939 = vpop.permute.xlu0 %1938
        %1940 = vrot.lane.b32.xlu0 %v1059, 64
        %v1941 = vpop.permute.xlu0 %1940
        %1942 = vrot.lane.b32.xlu0 %v1060, 64
        %v1943 = vpop.permute.xlu0 %1942
        %1944 = vrot.lane.b32.xlu0 %v1061, 64
        %v1945 = vpop.permute.xlu0 %1944
        %1946 = vrot.lane.b32.xlu0 %v1062, 64
        %v1947 = vpop.permute.xlu0 %1946
        %1948 = vrot.lane.b32.xlu0 %v1063, 64
        %v1949 = vpop.permute.xlu0 %1948
        %1950 = vrot.lane.b32.xlu0 %v1064, 64
        %v1951 = vpop.permute.xlu0 %1950
        %1952 = vrot.lane.b32.xlu0 %v1065, 64
        %v1953 = vpop.permute.xlu0 %1952
        %1954 = vrot.lane.b32.xlu0 %v1066, 64
        %v1955 = vpop.permute.xlu0 %1954
        %1956 = vrot.lane.b32.xlu0 %v1067, 64
        %v1957 = vpop.permute.xlu0 %1956
        %1958 = vrot.lane.b32.xlu0 %v1068, 64
        %v1959 = vpop.permute.xlu0 %1958
        %1960 = vrot.lane.b32.xlu0 %v1069, 64
        %v1961 = vpop.permute.xlu0 %1960
        %1962 = vrot.lane.b32.xlu0 %v1070, 64
        %v1963 = vpop.permute.xlu0 %1962
        %1964 = vrot.lane.b32.xlu0 %v1071, 64
        %v1965 = vpop.permute.xlu0 %1964
        %1966 = vrot.lane.b32.xlu0 %v1072, 64
        %v1967 = vpop.permute.xlu0 %1966
        %1968 = vrot.lane.b32.xlu0 %v1073, 64
        %v1969 = vpop.permute.xlu0 %1968
        %1970 = vrot.lane.b32.xlu0 %v1074, 64
        %v1971 = vpop.permute.xlu0 %1970
        %1972 = vrot.lane.b32.xlu0 %v1531, 64
        %v1973 = vpop.permute.xlu0 %1972
        %1974 = vrot.lane.b32.xlu0 %v1532, 64
        %v1975 = vpop.permute.xlu0 %1974
        %1976 = vrot.lane.b32.xlu0 0.0, 64
        %v1977 = vpop.permute.xlu0 %1976
        %vm2009 = vcmask 589312
        %2010 = vst.msk [vmem:[#allocation2] sm:$0xff] %vm2009, %v1917
        %2011 = vst.msk [vmem:[#allocation2 + $0x8] sm:$0xff] %vm2009, %v1919
        %2012 = vst.msk [vmem:[#allocation2 + $0x10] sm:$0xff] %vm2009, %v1921
        %2013 = vst.msk [vmem:[#allocation2 + $0x18] sm:$0xff] %vm2009, %v1923
        %2014 = vst.msk [vmem:[#allocation2 + $0x20] sm:$0xff] %vm2009, %v1925
        %2015 = vst.msk [vmem:[#allocation2 + $0x28] sm:$0xff] %vm2009, %v1927
        %2016 = vst.msk [vmem:[#allocation2 + $0x30] sm:$0xff] %vm2009, %v1929
        %2017 = vst.msk [vmem:[#allocation2 + $0x38] sm:$0xff] %vm2009, %v1931
        %2018 = vst.msk [vmem:[#allocation2 + $0x40] sm:$0xff] %vm2009, %v1933
        %2019 = vst.msk [vmem:[#allocation2 + $0x48] sm:$0xff] %vm2009, %v1935
        %2020 = vst.msk [vmem:[#allocation2 + $0x50] sm:$0xff] %vm2009, %v1937
        %2021 = vst.msk [vmem:[#allocation2 + $0x58] sm:$0xff] %vm2009, %v1939
        %2022 = vst.msk [vmem:[#allocation2 + $0x60] sm:$0xff] %vm2009, %v1941
        %2023 = vst.msk [vmem:[#allocation2 + $0x68] sm:$0xff] %vm2009, %v1943
        %2024 = vst.msk [vmem:[#allocation2 + $0x70] sm:$0xff] %vm2009, %v1945
        %2025 = vst.msk [vmem:[#allocation2 + $0x78] sm:$0xff] %vm2009, %v1947
        %2026 = vst.msk [vmem:[#allocation2 + $0x80] sm:$0xff] %vm2009, %v1949
        %2027 = vst.msk [vmem:[#allocation2 + $0x88] sm:$0xff] %vm2009, %v1951
        %2028 = vst.msk [vmem:[#allocation2 + $0x90] sm:$0xff] %vm2009, %v1953
        %2029 = vst.msk [vmem:[#allocation2 + $0x98] sm:$0xff] %vm2009, %v1955
        %2030 = vst.msk [vmem:[#allocation2 + $0xa0] sm:$0xff] %vm2009, %v1957
        %2031 = vst.msk [vmem:[#allocation2 + $0xa8] sm:$0xff] %vm2009, %v1959
        %2032 = vst.msk [vmem:[#allocation2 + $0xb0] sm:$0xff] %vm2009, %v1961
        %2033 = vst.msk [vmem:[#allocation2 + $0xb8] sm:$0xff] %vm2009, %v1963
        %2034 = vst.msk [vmem:[#allocation2 + $0xc0] sm:$0xff] %vm2009, %v1965
        %2035 = vst.msk [vmem:[#allocation2 + $0xc8] sm:$0xff] %vm2009, %v1967
        %2036 = vst.msk [vmem:[#allocation2 + $0xd0] sm:$0xff] %vm2009, %v1969
        %2037 = vst.msk [vmem:[#allocation2 + $0xd8] sm:$0xff] %vm2009, %v1971
        %2038 = vst.msk [vmem:[#allocation2 + $0xe0] sm:$0xff] %vm2009, %v1973
        %2039 = vst.msk [vmem:[#allocation2 + $0xe8] sm:$0xff] %vm2009, %v1975
        %2040 = vst.msk [vmem:[#allocation2 + $0xf0] sm:$0xff] %vm2009, %v1977
        %2041 = vst.msk [vmem:[#allocation2 + $0xf8] sm:$0xff] %vm2009, %v1977
        %v2042 = vld [vmem:[#allocation2] sm:$0xff]
        %v2043 = vld [vmem:[#allocation2 + $0x8] sm:$0xff]
        %v2044 = vld [vmem:[#allocation2 + $0x10] sm:$0xff]
        %v2045 = vld [vmem:[#allocation2 + $0x18] sm:$0xff]
        %v2046 = vld [vmem:[#allocation2 + $0x20] sm:$0xff]
        %v2047 = vld [vmem:[#allocation2 + $0x28] sm:$0xff]
        %v2048 = vld [vmem:[#allocation2 + $0x30] sm:$0xff]
        %v2049 = vld [vmem:[#allocation2 + $0x38] sm:$0xff]
        %v2050 = vld [vmem:[#allocation2 + $0x40] sm:$0xff]
        %v2051 = vld [vmem:[#allocation2 + $0x48] sm:$0xff]
        %v2052 = vld [vmem:[#allocation2 + $0x50] sm:$0xff]
        %v2053 = vld [vmem:[#allocation2 + $0x58] sm:$0xff]
        %v2054 = vld [vmem:[#allocation2 + $0x60] sm:$0xff]
        %v2055 = vld [vmem:[#allocation2 + $0x68] sm:$0xff]
        %v2056 = vld [vmem:[#allocation2 + $0x70] sm:$0xff]
        %v2057 = vld [vmem:[#allocation2 + $0x78] sm:$0xff]
        %v2058 = vld [vmem:[#allocation2 + $0x80] sm:$0xff]
        %v2059 = vld [vmem:[#allocation2 + $0x88] sm:$0xff]
        %v2060 = vld [vmem:[#allocation2 + $0x90] sm:$0xff]
        %v2061 = vld [vmem:[#allocation2 + $0x98] sm:$0xff]
        %v2062 = vld [vmem:[#allocation2 + $0xa0] sm:$0xff]
        %v2063 = vld [vmem:[#allocation2 + $0xa8] sm:$0xff]
        %v2064 = vld [vmem:[#allocation2 + $0xb0] sm:$0xff]
        %v2065 = vld [vmem:[#allocation2 + $0xb8] sm:$0xff]
        %v2066 = vld [vmem:[#allocation2 + $0xc0] sm:$0xff]
        %v2067 = vld [vmem:[#allocation2 + $0xc8] sm:$0xff]
        %v2068 = vld [vmem:[#allocation2 + $0xd0] sm:$0xff]
        %v2069 = vld [vmem:[#allocation2 + $0xd8] sm:$0xff]
        %v2070 = vld [vmem:[#allocation2 + $0xe0] sm:$0xff]
        %v2071 = vld [vmem:[#allocation2 + $0xe8] sm:$0xff]
        %v2072 = vld [vmem:[#allocation2 + $0xf0] sm:$0xff]
        %v2073 = vld [vmem:[#allocation2 + $0xf8] sm:$0xff]
        %v2074 = vld [vmem:[%s3] sm:$0xff]
        %v2075 = vld [vmem:[%s3 + $0x8] sm:$0xff]
        %v2076 = vld [vmem:[%s3 + $0x10] sm:$0xff]
        %v2077 = vld [vmem:[%s3 + $0x18] sm:$0xff]
        %v2078 = vld [vmem:[%s3 + $0x20] sm:$0xff]
        %v2079 = vld [vmem:[%s3 + $0x28] sm:$0xff]
        %v2080 = vld [vmem:[%s3 + $0x30] sm:$0xff]
        %v2081 = vld [vmem:[%s3 + $0x38] sm:$0xff]
        %v2082 = vld [vmem:[%s3 + $0x40] sm:$0xff]
        %v2083 = vld [vmem:[%s4] sm:$0x1]
        %v2085 = vlaneseq
        %v2086 = vshrl.u32 %v2085, 7
        %v2087 = vsub.s32 0, %v2086
        %v2088 = vrot.slane %v2083, %v2087
        %vm2090 = vcmask 588800
        %v2092 = vsel %vm2090, %v2042, 0
        %v2095 = vsel %vm2090, %v2043, 0
        %v2098 = vsel %vm2090, %v2044, 0
        %v2101 = vsel %vm2090, %v2045, 0
        %v2104 = vsel %vm2090, %v2046, 0
        %v2107 = vsel %vm2090, %v2047, 0
        %v2110 = vsel %vm2090, %v2048, 0
        %v2113 = vsel %vm2090, %v2049, 0
        %v2116 = vsel %vm2090, %v2050, 0
        %v2119 = vsel %vm2090, %v2051, 0
        %v2122 = vsel %vm2090, %v2052, 0
        %v2125 = vsel %vm2090, %v2053, 0
        %v2128 = vsel %vm2090, %v2054, 0
        %v2131 = vsel %vm2090, %v2055, 0
        %v2134 = vsel %vm2090, %v2056, 0
        %v2137 = vsel %vm2090, %v2057, 0
        %v2140 = vsel %vm2090, %v2058, 0
        %v2143 = vsel %vm2090, %v2059, 0
        %v2146 = vsel %vm2090, %v2060, 0
        %v2149 = vsel %vm2090, %v2061, 0
        %v2152 = vsel %vm2090, %v2062, 0
        %v2155 = vsel %vm2090, %v2063, 0
        %v2158 = vsel %vm2090, %v2064, 0
        %v2161 = vsel %vm2090, %v2065, 0
        %v2164 = vsel %vm2090, %v2066, 0
        %v2167 = vsel %vm2090, %v2067, 0
        %v2170 = vsel %vm2090, %v2068, 0
        %v2173 = vsel %vm2090, %v2069, 0
        %v2176 = vsel %vm2090, %v2070, 0
        %v2179 = vsel %vm2090, %v2071, 0
        %v2182 = vsel %vm2090, %v2072, 0
        %v2185 = vsel %vm2090, %v2073, 0
        %2187 = vmatprep.subr.mxu0 0.0
        %2188 = vmatpush1.msra.mxu0 %v2074
        %2189 = vmatprep.subr.mxu0 0.0
        %2190 = vmatpush1.msra.mxu0 %v2075
        %2191 = vmatprep.subr.mxu0 0.0
        %2192 = vmatpush1.msra.mxu0 %v2076
        %2193 = vmatprep.subr.mxu0 0.0
        %2194 = vmatpush1.msra.mxu0 %v2077
        %2195 = vmatprep.subr.mxu0 0.0
        %2196 = vmatpush1.msra.mxu0 %v2078
        %2197 = vmatprep.subr.mxu0 0.0
        %2198 = vmatpush1.msra.mxu0 %v2079
        %2199 = vmatprep.subr.mxu0 0.0
        %2200 = vmatpush1.msra.mxu0 %v2080
        %2201 = vmatprep.subr.mxu0 0.0
        %2202 = vmatpush1.msra.mxu0 %v2081
        %2203 = vmatprep.subr.mxu0 0.0
        %2204 = vmatpush1.msra.mxu0 %v2082
        %2205 = vmatprep.subr.mxu0 0.0
        %2206 = vmatpush1.msra.mxu0 0.0
        %2207 = vmatprep.subr.mxu0 0.0
        %2208 = vmatpush1.msra.mxu0 0.0
        %2209 = vmatprep.subr.mxu0 0.0
        %2210 = vmatpush1.msra.mxu0 0.0
        %2211 = vmatprep.subr.mxu0 0.0
        %2212 = vmatpush1.msra.mxu0 0.0
        %2213 = vmatprep.subr.mxu0 0.0
        %2214 = vmatpush1.msra.mxu0 0.0
        %2215 = vmatprep.subr.mxu0 0.0
        %2216 = vmatpush1.msra.mxu0 0.0
        %2217 = vmatprep.subr.mxu0 0.0
        %2218 = vmatpush1.msra.mxu0 0.0
        %2219 = vmatprep.subr.mxu0 0.0
        %2220 = vmatpush1.msra.mxu0 0.0
        %2221 = vmatprep.subr.mxu0 0.0
        %2222 = vmatpush1.msra.mxu0 0.0
        %2223 = vmatprep.subr.mxu0 0.0
        %2224 = vmatpush1.msra.mxu0 0.0
        %2225 = vmatprep.subr.mxu0 0.0
        %2226 = vmatpush1.msra.mxu0 0.0
        %2227 = vmatprep.subr.mxu0 0.0
        %2228 = vmatpush1.msra.mxu0 0.0
        %2229 = vmatprep.subr.mxu0 0.0
        %2230 = vmatpush1.msra.mxu0 0.0
        %2231 = vmatprep.subr.mxu0 0.0
        %2232 = vmatpush1.msra.mxu0 0.0
        %2233 = vmatprep.subr.mxu0 0.0
        %2234 = vmatpush1.msra.mxu0 0.0
        %2235 = vmatprep.subr.mxu0 0.0
        %2236 = vmatpush1.msra.mxu0 0.0
        %2237 = vmatprep.subr.mxu0 0.0
        %2238 = vmatpush1.msra.mxu0 0.0
        %2239 = vmatprep.subr.mxu0 0.0
        %2240 = vmatpush1.msra.mxu0 0.0
        %2241 = vmatprep.subr.mxu0 0.0
        %2242 = vmatpush1.msra.mxu0 0.0
        %2243 = vmatprep.subr.mxu0 0.0
        %2244 = vmatpush1.msra.mxu0 0.0
        %2245 = vmatprep.subr.mxu0 0.0
        %2246 = vmatpush1.msra.mxu0 0.0
        %2247 = vmatprep.subr.mxu0 0.0
        %2248 = vmatpush1.msra.mxu0 0.0
        %2249 = vmatprep.subr.mxu0 0.0
        %2250 = vmatpush1.msra.mxu0 0.0
        %2251 = vmatprep.mubr.f32.mxu0 0.0
        %2252 = vmatmul.mubr.f32.gmra.mrb[0].mxu0 %v2092
        %v2253 = vpop.f32.mrb[0].mxu0
        %v2254 = vadd.f32 %v2088, %v2253
        %v2255 = vpop.f32.mrb[0].mxu0
        %2256 = vmatprep.mubr.f32.mxu0 0.0
        %2257 = vmatmul.mubr.f32.gmra.mrb[0].mxu0 %v2095
        %v2258 = vpop.f32.mrb[0].mxu0
        %v2259 = vadd.f32 %v2088, %v2258
        %v2260 = vpop.f32.mrb[0].mxu0
        %2261 = vmatprep.mubr.f32.mxu0 0.0
        %2262 = vmatmul.mubr.f32.gmra.mrb[0].mxu0 %v2098
        %v2263 = vpop.f32.mrb[0].mxu0
        %v2264 = vadd.f32 %v2088, %v2263
        %v2265 = vpop.f32.mrb[0].mxu0
        %2266 = vmatprep.mubr.f32.mxu0 0.0
        %2267 = vmatmul.mubr.f32.gmra.mrb[0].mxu0 %v2101
        %v2268 = vpop.f32.mrb[0].mxu0
        %v2269 = vadd.f32 %v2088, %v2268
        %v2270 = vpop.f32.mrb[0].mxu0
        %2271 = vmatprep.mubr.f32.mxu0 0.0
        %2272 = vmatmul.mubr.f32.gmra.mrb[0].mxu0 %v2104
        %v2273 = vpop.f32.mrb[0].mxu0
        %v2274 = vadd.f32 %v2088, %v2273
        %v2275 = vpop.f32.mrb[0].mxu0
        %2276 = vmatprep.mubr.f32.mxu0 0.0
        %2277 = vmatmul.mubr.f32.gmra.mrb[0].mxu0 %v2107
        %v2278 = vpop.f32.mrb[0].mxu0
        %v2279 = vadd.f32 %v2088, %v2278
        %v2280 = vpop.f32.mrb[0].mxu0
        %2281 = vmatprep.mubr.f32.mxu0 0.0
        %2282 = vmatmul.mubr.f32.gmra.mrb[0].mxu0 %v2110
        %v2283 = vpop.f32.mrb[0].mxu0
        %v2284 = vadd.f32 %v2088, %v2283
        %v2285 = vpop.f32.mrb[0].mxu0
        %2286 = vmatprep.mubr.f32.mxu0 0.0
        %2287 = vmatmul.mubr.f32.gmra.mrb[0].mxu0 %v2113
        %v2288 = vpop.f32.mrb[0].mxu0
        %v2289 = vadd.f32 %v2088, %v2288
        %v2290 = vpop.f32.mrb[0].mxu0
        %2291 = vmatprep.mubr.f32.mxu0 0.0
        %2292 = vmatmul.mubr.f32.gmra.mrb[0].mxu0 %v2116
        %v2293 = vpop.f32.mrb[0].mxu0
        %v2294 = vadd.f32 %v2088, %v2293
        %v2295 = vpop.f32.mrb[0].mxu0
        %2296 = vmatprep.mubr.f32.mxu0 0.0
        %2297 = vmatmul.mubr.f32.gmra.mrb[0].mxu0 %v2119
        %v2298 = vpop.f32.mrb[0].mxu0
        %v2299 = vadd.f32 %v2088, %v2298
        %v2300 = vpop.f32.mrb[0].mxu0
        %2301 = vmatprep.mubr.f32.mxu0 0.0
        %2302 = vmatmul.mubr.f32.gmra.mrb[0].mxu0 %v2122
        %v2303 = vpop.f32.mrb[0].mxu0
        %v2304 = vadd.f32 %v2088, %v2303
        %v2305 = vpop.f32.mrb[0].mxu0
        %2306 = vmatprep.mubr.f32.mxu0 0.0
        %2307 = vmatmul.mubr.f32.gmra.mrb[0].mxu0 %v2125
        %v2308 = vpop.f32.mrb[0].mxu0
        %v2309 = vadd.f32 %v2088, %v2308
        %v2310 = vpop.f32.mrb[0].mxu0
        %2311 = vmatprep.mubr.f32.mxu0 0.0
        %2312 = vmatmul.mubr.f32.gmra.mrb[0].mxu0 %v2128
        %v2313 = vpop.f32.mrb[0].mxu0
        %v2314 = vadd.f32 %v2088, %v2313
        %v2315 = vpop.f32.mrb[0].mxu0
        %2316 = vmatprep.mubr.f32.mxu0 0.0
        %2317 = vmatmul.mubr.f32.gmra.mrb[0].mxu0 %v2131
        %v2318 = vpop.f32.mrb[0].mxu0
        %v2319 = vadd.f32 %v2088, %v2318
        %v2320 = vpop.f32.mrb[0].mxu0
        %2321 = vmatprep.mubr.f32.mxu0 0.0
        %2322 = vmatmul.mubr.f32.gmra.mrb[0].mxu0 %v2134
        %v2323 = vpop.f32.mrb[0].mxu0
        %v2324 = vadd.f32 %v2088, %v2323
        %v2325 = vpop.f32.mrb[0].mxu0
        %2326 = vmatprep.mubr.f32.mxu0 0.0
        %2327 = vmatmul.mubr.f32.gmra.mrb[0].mxu0 %v2137
        %v2328 = vpop.f32.mrb[0].mxu0
        %v2329 = vadd.f32 %v2088, %v2328
        %v2330 = vpop.f32.mrb[0].mxu0
        %2331 = vmatprep.mubr.f32.mxu0 0.0
        %2332 = vmatmul.mubr.f32.gmra.mrb[0].mxu0 %v2140
        %v2333 = vpop.f32.mrb[0].mxu0
        %v2334 = vadd.f32 %v2088, %v2333
        %v2335 = vpop.f32.mrb[0].mxu0
        %2336 = vmatprep.mubr.f32.mxu0 0.0
        %2337 = vmatmul.mubr.f32.gmra.mrb[0].mxu0 %v2143
        %v2338 = vpop.f32.mrb[0].mxu0
        %v2339 = vadd.f32 %v2088, %v2338
        %v2340 = vpop.f32.mrb[0].mxu0
        %2341 = vmatprep.mubr.f32.mxu0 0.0
        %2342 = vmatmul.mubr.f32.gmra.mrb[0].mxu0 %v2146
        %v2343 = vpop.f32.mrb[0].mxu0
        %v2344 = vadd.f32 %v2088, %v2343
        %v2345 = vpop.f32.mrb[0].mxu0
        %2346 = vmatprep.mubr.f32.mxu0 0.0
        %2347 = vmatmul.mubr.f32.gmra.mrb[0].mxu0 %v2149
        %v2348 = vpop.f32.mrb[0].mxu0
        %v2349 = vadd.f32 %v2088, %v2348
        %v2350 = vpop.f32.mrb[0].mxu0
        %2351 = vmatprep.mubr.f32.mxu0 0.0
        %2352 = vmatmul.mubr.f32.gmra.mrb[0].mxu0 %v2152
        %v2353 = vpop.f32.mrb[0].mxu0
        %v2354 = vadd.f32 %v2088, %v2353
        %v2355 = vpop.f32.mrb[0].mxu0
        %2356 = vmatprep.mubr.f32.mxu0 0.0
        %2357 = vmatmul.mubr.f32.gmra.mrb[0].mxu0 %v2155
        %v2358 = vpop.f32.mrb[0].mxu0
        %v2359 = vadd.f32 %v2088, %v2358
        %v2360 = vpop.f32.mrb[0].mxu0
        %2361 = vmatprep.mubr.f32.mxu0 0.0
        %2362 = vmatmul.mubr.f32.gmra.mrb[0].mxu0 %v2158
        %v2363 = vpop.f32.mrb[0].mxu0
        %v2364 = vadd.f32 %v2088, %v2363
        %v2365 = vpop.f32.mrb[0].mxu0
        %2366 = vmatprep.mubr.f32.mxu0 0.0
        %2367 = vmatmul.mubr.f32.gmra.mrb[0].mxu0 %v2161
        %v2368 = vpop.f32.mrb[0].mxu0
        %v2369 = vadd.f32 %v2088, %v2368
        %v2370 = vpop.f32.mrb[0].mxu0
        %2371 = vmatprep.mubr.f32.mxu0 0.0
        %2372 = vmatmul.mubr.f32.gmra.mrb[0].mxu0 %v2164
        %v2373 = vpop.f32.mrb[0].mxu0
        %v2374 = vadd.f32 %v2088, %v2373
        %v2375 = vpop.f32.mrb[0].mxu0
        %2376 = vmatprep.mubr.f32.mxu0 0.0
        %2377 = vmatmul.mubr.f32.gmra.mrb[0].mxu0 %v2167
        %v2378 = vpop.f32.mrb[0].mxu0
        %v2379 = vadd.f32 %v2088, %v2378
        %v2380 = vpop.f32.mrb[0].mxu0
        %2381 = vmatprep.mubr.f32.mxu0 0.0
        %2382 = vmatmul.mubr.f32.gmra.mrb[0].mxu0 %v2170
        %v2383 = vpop.f32.mrb[0].mxu0
        %v2384 = vadd.f32 %v2088, %v2383
        %v2385 = vpop.f32.mrb[0].mxu0
        %2386 = vmatprep.mubr.f32.mxu0 0.0
        %2387 = vmatmul.mubr.f32.gmra.mrb[0].mxu0 %v2173
        %v2388 = vpop.f32.mrb[0].mxu0
        %v2389 = vadd.f32 %v2088, %v2388
        %v2390 = vpop.f32.mrb[0].mxu0
        %2391 = vmatprep.mubr.f32.mxu0 0.0
        %2392 = vmatmul.mubr.f32.gmra.mrb[0].mxu0 %v2176
        %v2393 = vpop.f32.mrb[0].mxu0
        %v2394 = vadd.f32 %v2088, %v2393
        %v2395 = vpop.f32.mrb[0].mxu0
        %2396 = vmatprep.mubr.f32.mxu0 0.0
        %2397 = vmatmul.mubr.f32.gmra.mrb[0].mxu0 %v2179
        %v2398 = vpop.f32.mrb[0].mxu0
        %v2399 = vadd.f32 %v2088, %v2398
        %v2400 = vpop.f32.mrb[0].mxu0
        %2401 = vmatprep.mubr.f32.mxu0 0.0
        %2402 = vmatmul.mubr.f32.gmra.mrb[0].mxu0 %v2182
        %v2403 = vpop.f32.mrb[0].mxu0
        %v2404 = vadd.f32 %v2088, %v2403
        %v2405 = vpop.f32.mrb[0].mxu0
        %2406 = vmatprep.mubr.f32.mxu0 0.0
        %2407 = vmatmul.mubr.f32.gmra.mrb[0].mxu0 %v2185
        %v2408 = vpop.f32.mrb[0].mxu0
        %v2409 = vadd.f32 %v2088, %v2408
        %v2410 = vpop.f32.mrb[0].mxu0
        %2411 = vdwg.mxu0
        %v2412 = vmax.f32 %v2254, 0.0
        %v2413 = vmax.f32 %v2259, 0.0
        %v2414 = vmax.f32 %v2264, 0.0
        %v2415 = vmax.f32 %v2269, 0.0
        %v2416 = vmax.f32 %v2274, 0.0
        %v2417 = vmax.f32 %v2279, 0.0
        %v2418 = vmax.f32 %v2284, 0.0
        %v2419 = vmax.f32 %v2289, 0.0
        %v2420 = vmax.f32 %v2294, 0.0
        %v2421 = vmax.f32 %v2299, 0.0
        %v2422 = vmax.f32 %v2304, 0.0
        %v2423 = vmax.f32 %v2309, 0.0
        %v2424 = vmax.f32 %v2314, 0.0
        %v2425 = vmax.f32 %v2319, 0.0
        %v2426 = vmax.f32 %v2324, 0.0
        %v2427 = vmax.f32 %v2329, 0.0
        %v2428 = vmax.f32 %v2334, 0.0
        %v2429 = vmax.f32 %v2339, 0.0
        %v2430 = vmax.f32 %v2344, 0.0
        %v2431 = vmax.f32 %v2349, 0.0
        %v2432 = vmax.f32 %v2354, 0.0
        %v2433 = vmax.f32 %v2359, 0.0
        %v2434 = vmax.f32 %v2364, 0.0
        %v2435 = vmax.f32 %v2369, 0.0
        %v2436 = vmax.f32 %v2374, 0.0
        %v2437 = vmax.f32 %v2379, 0.0
        %v2438 = vmax.f32 %v2384, 0.0
        %v2439 = vmax.f32 %v2389, 0.0
        %v2440 = vmax.f32 %v2394, 0.0
        %v2441 = vmax.f32 %v2399, 0.0
        %v2442 = vmax.f32 %v2404, 0.0
        %v2443 = vmax.f32 %v2409, 0.0
        %v2444 = vld [vmem:[%s5] sm:$0xff]
        %v2445 = vld [vmem:[%s6] sm:$0x1]
        %v2447 = vlaneseq
        %v2448 = vshrl.u32 %v2447, 7
        %v2449 = vsub.s32 0, %v2448
        %v2450 = vrot.slane %v2445, %v2449
        %v2453 = vsel %vm791, %v2412, 0
        %v2456 = vsel %vm791, %v2413, 0
        %v2459 = vsel %vm791, %v2414, 0
        %v2462 = vsel %vm791, %v2415, 0
        %v2465 = vsel %vm791, %v2416, 0
        %v2468 = vsel %vm791, %v2417, 0
        %v2471 = vsel %vm791, %v2418, 0
        %v2474 = vsel %vm791, %v2419, 0
        %v2477 = vsel %vm791, %v2420, 0
        %v2480 = vsel %vm791, %v2421, 0
        %v2483 = vsel %vm791, %v2422, 0
        %v2486 = vsel %vm791, %v2423, 0
        %v2489 = vsel %vm791, %v2424, 0
        %v2492 = vsel %vm791, %v2425, 0
        %v2495 = vsel %vm791, %v2426, 0
        %v2498 = vsel %vm791, %v2427, 0
        %v2501 = vsel %vm791, %v2428, 0
        %v2504 = vsel %vm791, %v2429, 0
        %v2507 = vsel %vm791, %v2430, 0
        %v2510 = vsel %vm791, %v2431, 0
        %v2513 = vsel %vm791, %v2432, 0
        %v2516 = vsel %vm791, %v2433, 0
        %v2519 = vsel %vm791, %v2434, 0
        %v2522 = vsel %vm791, %v2435, 0
        %v2525 = vsel %vm791, %v2436, 0
        %v2528 = vsel %vm791, %v2437, 0
        %v2531 = vsel %vm791, %v2438, 0
        %v2534 = vsel %vm791, %v2439, 0
        %v2537 = vsel %vm791, %v2440, 0
        %v2540 = vsel %vm791, %v2441, 0
        %v2543 = vsel %vm791, %v2442, 0
        %v2546 = vsel %vm791, %v2443, 0
        %2548 = vmatprep.subr.mxu0 0.0
        %2549 = vmatpush1.msra.mxu0 %v2444
        %2550 = vmatprep.subr.mxu0 0.0
        %2551 = vmatpush1.msra.mxu0 0.0
        %2552 = vmatprep.subr.mxu0 0.0
        %2553 = vmatpush1.msra.mxu0 0.0
        %2554 = vmatprep.subr.mxu0 0.0
        %2555 = vmatpush1.msra.mxu0 0.0
        %2556 = vmatprep.subr.mxu0 0.0
        %2557 = vmatpush1.msra.mxu0 0.0
        %2558 = vmatprep.subr.mxu0 0.0
        %2559 = vmatpush1.msra.mxu0 0.0
        %2560 = vmatprep.subr.mxu0 0.0
        %2561 = vmatpush1.msra.mxu0 0.0
        %2562 = vmatprep.subr.mxu0 0.0
        %2563 = vmatpush1.msra.mxu0 0.0
        %2564 = vmatprep.subr.mxu0 0.0
        %2565 = vmatpush1.msra.mxu0 0.0
        %2566 = vmatprep.subr.mxu0 0.0
        %2567 = vmatpush1.msra.mxu0 0.0
        %2568 = vmatprep.subr.mxu0 0.0
        %2569 = vmatpush1.msra.mxu0 0.0
        %2570 = vmatprep.subr.mxu0 0.0
        %2571 = vmatpush1.msra.mxu0 0.0
        %2572 = vmatprep.subr.mxu0 0.0
        %2573 = vmatpush1.msra.mxu0 0.0
        %2574 = vmatprep.subr.mxu0 0.0
        %2575 = vmatpush1.msra.mxu0 0.0
        %2576 = vmatprep.subr.mxu0 0.0
        %2577 = vmatpush1.msra.mxu0 0.0
        %2578 = vmatprep.subr.mxu0 0.0
        %2579 = vmatpush1.msra.mxu0 0.0
        %2580 = vmatprep.subr.mxu0 0.0
        %2581 = vmatpush1.msra.mxu0 0.0
        %2582 = vmatprep.subr.mxu0 0.0
        %2583 = vmatpush1.msra.mxu0 0.0
        %2584 = vmatprep.subr.mxu0 0.0
        %2585 = vmatpush1.msra.mxu0 0.0
        %2586 = vmatprep.subr.mxu0 0.0
        %2587 = vmatpush1.msra.mxu0 0.0
        %2588 = vmatprep.subr.mxu0 0.0
        %2589 = vmatpush1.msra.mxu0 0.0
        %2590 = vmatprep.subr.mxu0 0.0
        %2591 = vmatpush1.msra.mxu0 0.0
        %2592 = vmatprep.subr.mxu0 0.0
        %2593 = vmatpush1.msra.mxu0 0.0
        %2594 = vmatprep.subr.mxu0 0.0
        %2595 = vmatpush1.msra.mxu0 0.0
        %2596 = vmatprep.subr.mxu0 0.0
        %2597 = vmatpush1.msra.mxu0 0.0
        %2598 = vmatprep.subr.mxu0 0.0
        %2599 = vmatpush1.msra.mxu0 0.0
        %2600 = vmatprep.subr.mxu0 0.0
        %2601 = vmatpush1.msra.mxu0 0.0
        %2602 = vmatprep.subr.mxu0 0.0
        %2603 = vmatpush1.msra.mxu0 0.0
        %2604 = vmatprep.subr.mxu0 0.0
        %2605 = vmatpush1.msra.mxu0 0.0
        %2606 = vmatprep.subr.mxu0 0.0
        %2607 = vmatpush1.msra.mxu0 0.0
        %2608 = vmatprep.subr.mxu0 0.0
        %2609 = vmatpush1.msra.mxu0 0.0
        %2610 = vmatprep.subr.mxu0 0.0
        %2611 = vmatpush1.msra.mxu0 0.0
        %2612 = vmatprep.mubr.f32.mxu0 0.0
        %2613 = vmatmul.mubr.f32.gmra.mrb[0].mxu0 %v2453
        %v2614 = vpop.f32.mrb[0].mxu0
        %v2615 = vadd.f32 %v2450, %v2614
        %v2616 = vpop.f32.mrb[0].mxu0
        %2617 = vmatprep.mubr.f32.mxu0 0.0
        %2618 = vmatmul.mubr.f32.gmra.mrb[0].mxu0 %v2456
        %v2619 = vpop.f32.mrb[0].mxu0
        %v2620 = vadd.f32 %v2450, %v2619
        %v2621 = vpop.f32.mrb[0].mxu0
        %2622 = vmatprep.mubr.f32.mxu0 0.0
        %2623 = vmatmul.mubr.f32.gmra.mrb[0].mxu0 %v2459
        %v2624 = vpop.f32.mrb[0].mxu0
        %v2625 = vadd.f32 %v2450, %v2624
        %v2626 = vpop.f32.mrb[0].mxu0
        %2627 = vmatprep.mubr.f32.mxu0 0.0
        %2628 = vmatmul.mubr.f32.gmra.mrb[0].mxu0 %v2462
        %v2629 = vpop.f32.mrb[0].mxu0
        %v2630 = vadd.f32 %v2450, %v2629
        %v2631 = vpop.f32.mrb[0].mxu0
        %2632 = vmatprep.mubr.f32.mxu0 0.0
        %2633 = vmatmul.mubr.f32.gmra.mrb[0].mxu0 %v2465
        %v2634 = vpop.f32.mrb[0].mxu0
        %v2635 = vadd.f32 %v2450, %v2634
        %v2636 = vpop.f32.mrb[0].mxu0
        %2637 = vmatprep.mubr.f32.mxu0 0.0
        %2638 = vmatmul.mubr.f32.gmra.mrb[0].mxu0 %v2468
        %v2639 = vpop.f32.mrb[0].mxu0
        %v2640 = vadd.f32 %v2450, %v2639
        %v2641 = vpop.f32.mrb[0].mxu0
        %2642 = vmatprep.mubr.f32.mxu0 0.0
        %2643 = vmatmul.mubr.f32.gmra.mrb[0].mxu0 %v2471
        %v2644 = vpop.f32.mrb[0].mxu0
        %v2645 = vadd.f32 %v2450, %v2644
        %v2646 = vpop.f32.mrb[0].mxu0
        %2647 = vmatprep.mubr.f32.mxu0 0.0
        %2648 = vmatmul.mubr.f32.gmra.mrb[0].mxu0 %v2474
        %v2649 = vpop.f32.mrb[0].mxu0
        %v2650 = vadd.f32 %v2450, %v2649
        %v2651 = vpop.f32.mrb[0].mxu0
        %2652 = vmatprep.mubr.f32.mxu0 0.0
        %2653 = vmatmul.mubr.f32.gmra.mrb[0].mxu0 %v2477
        %v2654 = vpop.f32.mrb[0].mxu0
        %v2655 = vadd.f32 %v2450, %v2654
        %v2656 = vpop.f32.mrb[0].mxu0
        %2657 = vmatprep.mubr.f32.mxu0 0.0
        %2658 = vmatmul.mubr.f32.gmra.mrb[0].mxu0 %v2480
        %v2659 = vpop.f32.mrb[0].mxu0
        %v2660 = vadd.f32 %v2450, %v2659
        %v2661 = vpop.f32.mrb[0].mxu0
        %2662 = vmatprep.mubr.f32.mxu0 0.0
        %2663 = vmatmul.mubr.f32.gmra.mrb[0].mxu0 %v2483
        %v2664 = vpop.f32.mrb[0].mxu0
        %v2665 = vadd.f32 %v2450, %v2664
        %v2666 = vpop.f32.mrb[0].mxu0
        %2667 = vmatprep.mubr.f32.mxu0 0.0
        %2668 = vmatmul.mubr.f32.gmra.mrb[0].mxu0 %v2486
        %v2669 = vpop.f32.mrb[0].mxu0
        %v2670 = vadd.f32 %v2450, %v2669
        %v2671 = vpop.f32.mrb[0].mxu0
        %2672 = vmatprep.mubr.f32.mxu0 0.0
        %2673 = vmatmul.mubr.f32.gmra.mrb[0].mxu0 %v2489
        %v2674 = vpop.f32.mrb[0].mxu0
        %v2675 = vadd.f32 %v2450, %v2674
        %v2676 = vpop.f32.mrb[0].mxu0
        %2677 = vmatprep.mubr.f32.mxu0 0.0
        %2678 = vmatmul.mubr.f32.gmra.mrb[0].mxu0 %v2492
        %v2679 = vpop.f32.mrb[0].mxu0
        %v2680 = vadd.f32 %v2450, %v2679
        %v2681 = vpop.f32.mrb[0].mxu0
        %2682 = vmatprep.mubr.f32.mxu0 0.0
        %2683 = vmatmul.mubr.f32.gmra.mrb[0].mxu0 %v2495
        %v2684 = vpop.f32.mrb[0].mxu0
        %v2685 = vadd.f32 %v2450, %v2684
        %v2686 = vpop.f32.mrb[0].mxu0
        %2687 = vmatprep.mubr.f32.mxu0 0.0
        %2688 = vmatmul.mubr.f32.gmra.mrb[0].mxu0 %v2498
        %v2689 = vpop.f32.mrb[0].mxu0
        %v2690 = vadd.f32 %v2450, %v2689
        %v2691 = vpop.f32.mrb[0].mxu0
        %2692 = vmatprep.mubr.f32.mxu0 0.0
        %2693 = vmatmul.mubr.f32.gmra.mrb[0].mxu0 %v2501
        %v2694 = vpop.f32.mrb[0].mxu0
        %v2695 = vadd.f32 %v2450, %v2694
        %v2696 = vpop.f32.mrb[0].mxu0
        %2697 = vmatprep.mubr.f32.mxu0 0.0
        %2698 = vmatmul.mubr.f32.gmra.mrb[0].mxu0 %v2504
        %v2699 = vpop.f32.mrb[0].mxu0
        %v2700 = vadd.f32 %v2450, %v2699
        %v2701 = vpop.f32.mrb[0].mxu0
        %2702 = vmatprep.mubr.f32.mxu0 0.0
        %2703 = vmatmul.mubr.f32.gmra.mrb[0].mxu0 %v2507
        %v2704 = vpop.f32.mrb[0].mxu0
        %v2705 = vadd.f32 %v2450, %v2704
        %v2706 = vpop.f32.mrb[0].mxu0
        %2707 = vmatprep.mubr.f32.mxu0 0.0
        %2708 = vmatmul.mubr.f32.gmra.mrb[0].mxu0 %v2510
        %v2709 = vpop.f32.mrb[0].mxu0
        %v2710 = vadd.f32 %v2450, %v2709
        %v2711 = vpop.f32.mrb[0].mxu0
        %2712 = vmatprep.mubr.f32.mxu0 0.0
        %2713 = vmatmul.mubr.f32.gmra.mrb[0].mxu0 %v2513
        %v2714 = vpop.f32.mrb[0].mxu0
        %v2715 = vadd.f32 %v2450, %v2714
        %v2716 = vpop.f32.mrb[0].mxu0
        %2717 = vmatprep.mubr.f32.mxu0 0.0
        %2718 = vmatmul.mubr.f32.gmra.mrb[0].mxu0 %v2516
        %v2719 = vpop.f32.mrb[0].mxu0
        %v2720 = vadd.f32 %v2450, %v2719
        %v2721 = vpop.f32.mrb[0].mxu0
        %2722 = vmatprep.mubr.f32.mxu0 0.0
        %2723 = vmatmul.mubr.f32.gmra.mrb[0].mxu0 %v2519
        %v2724 = vpop.f32.mrb[0].mxu0
        %v2725 = vadd.f32 %v2450, %v2724
        %v2726 = vpop.f32.mrb[0].mxu0
        %2727 = vmatprep.mubr.f32.mxu0 0.0
        %2728 = vmatmul.mubr.f32.gmra.mrb[0].mxu0 %v2522
        %v2729 = vpop.f32.mrb[0].mxu0
        %v2730 = vadd.f32 %v2450, %v2729
        %v2731 = vpop.f32.mrb[0].mxu0
        %2732 = vmatprep.mubr.f32.mxu0 0.0
        %2733 = vmatmul.mubr.f32.gmra.mrb[0].mxu0 %v2525
        %v2734 = vpop.f32.mrb[0].mxu0
        %v2735 = vadd.f32 %v2450, %v2734
        %v2736 = vpop.f32.mrb[0].mxu0
        %2737 = vmatprep.mubr.f32.mxu0 0.0
        %2738 = vmatmul.mubr.f32.gmra.mrb[0].mxu0 %v2528
        %v2739 = vpop.f32.mrb[0].mxu0
        %v2740 = vadd.f32 %v2450, %v2739
        %v2741 = vpop.f32.mrb[0].mxu0
        %2742 = vmatprep.mubr.f32.mxu0 0.0
        %2743 = vmatmul.mubr.f32.gmra.mrb[0].mxu0 %v2531
        %v2744 = vpop.f32.mrb[0].mxu0
        %v2745 = vadd.f32 %v2450, %v2744
        %v2746 = vpop.f32.mrb[0].mxu0
        %2747 = vmatprep.mubr.f32.mxu0 0.0
        %2748 = vmatmul.mubr.f32.gmra.mrb[0].mxu0 %v2534
        %v2749 = vpop.f32.mrb[0].mxu0
        %v2750 = vadd.f32 %v2450, %v2749
        %v2751 = vpop.f32.mrb[0].mxu0
        %2752 = vmatprep.mubr.f32.mxu0 0.0
        %2753 = vmatmul.mubr.f32.gmra.mrb[0].mxu0 %v2537
        %v2754 = vpop.f32.mrb[0].mxu0
        %v2755 = vadd.f32 %v2450, %v2754
        %v2756 = vpop.f32.mrb[0].mxu0
        %2757 = vmatprep.mubr.f32.mxu0 0.0
        %2758 = vmatmul.mubr.f32.gmra.mrb[0].mxu0 %v2540
        %v2759 = vpop.f32.mrb[0].mxu0
        %v2760 = vadd.f32 %v2450, %v2759
        %v2761 = vpop.f32.mrb[0].mxu0
        %2762 = vmatprep.mubr.f32.mxu0 0.0
        %2763 = vmatmul.mubr.f32.gmra.mrb[0].mxu0 %v2543
        %v2764 = vpop.f32.mrb[0].mxu0
        %v2765 = vadd.f32 %v2450, %v2764
        %v2766 = vpop.f32.mrb[0].mxu0
        %2767 = vmatprep.mubr.f32.mxu0 0.0
        %2768 = vmatmul.mubr.f32.gmra.mrb[0].mxu0 %v2546
        %v2769 = vpop.f32.mrb[0].mxu0
        %v2770 = vadd.f32 %v2450, %v2769
        %v2771 = vpop.f32.mrb[0].mxu0
        %2772 = vdwg.mxu0
        %v2773 = vld [vmem:[%s266] sm:$0xff]
        %v2774 = vld [vmem:[%s266 + $0x8] sm:$0xff]
        %v2775 = vld [vmem:[%s266 + $0x10] sm:$0xff]
        %v2776 = vld [vmem:[%s266 + $0x18] sm:$0xff]
        %v2777 = vld [vmem:[%s266 + $0x20] sm:$0xff]
        %v2778 = vld [vmem:[%s266 + $0x28] sm:$0xff]
        %v2779 = vld [vmem:[%s266 + $0x30] sm:$0xff]
        %v2780 = vld [vmem:[%s266 + $0x38] sm:$0xff]
        %v2781 = vld [vmem:[%s266 + $0x40] sm:$0xff]
        %v2782 = vld [vmem:[%s266 + $0x48] sm:$0xff]
        %v2783 = vld [vmem:[%s266 + $0x50] sm:$0xff]
        %v2784 = vld [vmem:[%s266 + $0x58] sm:$0xff]
        %v2785 = vld [vmem:[%s266 + $0x60] sm:$0xff]
        %v2786 = vld [vmem:[%s266 + $0x68] sm:$0xff]
        %v2787 = vld [vmem:[%s266 + $0x70] sm:$0xff]
        %v2788 = vld [vmem:[%s266 + $0x78] sm:$0xff]
        %v2789 = vld [vmem:[%s266 + $0x80] sm:$0xff]
        %v2790 = vld [vmem:[%s266 + $0x88] sm:$0xff]
        %v2791 = vld [vmem:[%s266 + $0x90] sm:$0xff]
        %v2792 = vld [vmem:[%s266 + $0x98] sm:$0xff]
        %v2793 = vld [vmem:[%s266 + $0xa0] sm:$0xff]
        %v2794 = vld [vmem:[%s266 + $0xa8] sm:$0xff]
        %v2795 = vld [vmem:[%s266 + $0xb0] sm:$0xff]
        %v2796 = vld [vmem:[%s266 + $0xb8] sm:$0xff]
        %v2797 = vld [vmem:[%s266 + $0xc0] sm:$0xff]
        %v2798 = vld [vmem:[%s266 + $0xc8] sm:$0xff]
        %v2799 = vld [vmem:[%s266 + $0xd0] sm:$0xff]
        %v2800 = vld [vmem:[%s266 + $0xd8] sm:$0xff]
        %v2801 = vld [vmem:[%s266 + $0xe0] sm:$0xff]
        %v2802 = vld [vmem:[%s266 + $0xe8] sm:$0xff]
        %v2803 = vld [vmem:[%s266 + $0xf0] sm:$0xff]
        %v2804 = vld [vmem:[%s266 + $0xf8] sm:$0xff]
        %v2805 = vadd.f32 %v2615, %v2773
        %v2806 = vadd.f32 %v2620, %v2774
        %v2807 = vadd.f32 %v2625, %v2775
        %v2808 = vadd.f32 %v2630, %v2776
        %v2809 = vadd.f32 %v2635, %v2777
        %v2810 = vadd.f32 %v2640, %v2778
        %v2811 = vadd.f32 %v2645, %v2779
        %v2812 = vadd.f32 %v2650, %v2780
        %v2813 = vadd.f32 %v2655, %v2781
        %v2814 = vadd.f32 %v2660, %v2782
        %v2815 = vadd.f32 %v2665, %v2783
        %v2816 = vadd.f32 %v2670, %v2784
        %v2817 = vadd.f32 %v2675, %v2785
        %v2818 = vadd.f32 %v2680, %v2786
        %v2819 = vadd.f32 %v2685, %v2787
        %v2820 = vadd.f32 %v2690, %v2788
        %v2821 = vadd.f32 %v2695, %v2789
        %v2822 = vadd.f32 %v2700, %v2790
        %v2823 = vadd.f32 %v2705, %v2791
        %v2824 = vadd.f32 %v2710, %v2792
        %v2825 = vadd.f32 %v2715, %v2793
        %v2826 = vadd.f32 %v2720, %v2794
        %v2827 = vadd.f32 %v2725, %v2795
        %v2828 = vadd.f32 %v2730, %v2796
        %v2829 = vadd.f32 %v2735, %v2797
        %v2830 = vadd.f32 %v2740, %v2798
        %v2831 = vadd.f32 %v2745, %v2799
        %v2832 = vadd.f32 %v2750, %v2800
        %v2833 = vadd.f32 %v2755, %v2801
        %v2834 = vadd.f32 %v2760, %v2802
        %v2835 = vadd.f32 %v2765, %v2803
        %v2836 = vadd.f32 %v2770, %v2804
        %v2837 = vmax.f32 %v2805, 0.0
        %v2838 = vmax.f32 %v2806, 0.0
        %v2839 = vmax.f32 %v2807, 0.0
        %v2840 = vmax.f32 %v2808, 0.0
        %v2841 = vmax.f32 %v2809, 0.0
        %v2842 = vmax.f32 %v2810, 0.0
        %v2843 = vmax.f32 %v2811, 0.0
        %v2844 = vmax.f32 %v2812, 0.0
        %v2845 = vmax.f32 %v2813, 0.0
        %v2846 = vmax.f32 %v2814, 0.0
        %v2847 = vmax.f32 %v2815, 0.0
        %v2848 = vmax.f32 %v2816, 0.0
        %v2849 = vmax.f32 %v2817, 0.0
        %v2850 = vmax.f32 %v2818, 0.0
        %v2851 = vmax.f32 %v2819, 0.0
        %v2852 = vmax.f32 %v2820, 0.0
        %v2853 = vmax.f32 %v2821, 0.0
        %v2854 = vmax.f32 %v2822, 0.0
        %v2855 = vmax.f32 %v2823, 0.0
        %v2856 = vmax.f32 %v2824, 0.0
        %v2857 = vmax.f32 %v2825, 0.0
        %v2858 = vmax.f32 %v2826, 0.0
        %v2859 = vmax.f32 %v2827, 0.0
        %v2860 = vmax.f32 %v2828, 0.0
        %v2861 = vmax.f32 %v2829, 0.0
        %v2862 = vmax.f32 %v2830, 0.0
        %v2863 = vmax.f32 %v2831, 0.0
        %v2864 = vmax.f32 %v2832, 0.0
        %v2865 = vmax.f32 %v2833, 0.0
        %v2866 = vmax.f32 %v2834, 0.0
        %v2867 = vmax.f32 %v2835, 0.0
        %v2868 = vmax.f32 %v2836, 0.0
        %2869 = vst.msk [vmem:[%s296] sm:$0xff] %vm340, %v2837
        %2870 = vst.msk [vmem:[%s296 + $0x8] sm:$0xff] %vm340, %v2838
        %2871 = vst.msk [vmem:[%s296 + $0x10] sm:$0xff] %vm340, %v2839
        %2872 = vst.msk [vmem:[%s296 + $0x18] sm:$0xff] %vm340, %v2840
        %2873 = vst.msk [vmem:[%s296 + $0x20] sm:$0xff] %vm340, %v2841
        %2874 = vst.msk [vmem:[%s296 + $0x28] sm:$0xff] %vm340, %v2842
        %2875 = vst.msk [vmem:[%s296 + $0x30] sm:$0xff] %vm340, %v2843
        %2876 = vst.msk [vmem:[%s296 + $0x38] sm:$0xff] %vm340, %v2844
        %2877 = vst.msk [vmem:[%s296 + $0x40] sm:$0xff] %vm340, %v2845
        %2878 = vst.msk [vmem:[%s296 + $0x48] sm:$0xff] %vm340, %v2846
        %2879 = vst.msk [vmem:[%s296 + $0x50] sm:$0xff] %vm340, %v2847
        %2880 = vst.msk [vmem:[%s296 + $0x58] sm:$0xff] %vm340, %v2848
        %2881 = vst.msk [vmem:[%s296 + $0x60] sm:$0xff] %vm340, %v2849
        %2882 = vst.msk [vmem:[%s296 + $0x68] sm:$0xff] %vm340, %v2850
        %2883 = vst.msk [vmem:[%s296 + $0x70] sm:$0xff] %vm340, %v2851
        %2884 = vst.msk [vmem:[%s296 + $0x78] sm:$0xff] %vm340, %v2852
        %2885 = vst.msk [vmem:[%s296 + $0x80] sm:$0xff] %vm340, %v2853
        %2886 = vst.msk [vmem:[%s296 + $0x88] sm:$0xff] %vm340, %v2854
        %2887 = vst.msk [vmem:[%s296 + $0x90] sm:$0xff] %vm340, %v2855
        %2888 = vst.msk [vmem:[%s296 + $0x98] sm:$0xff] %vm340, %v2856
        %2889 = vst.msk [vmem:[%s296 + $0xa0] sm:$0xff] %vm340, %v2857
        %2890 = vst.msk [vmem:[%s296 + $0xa8] sm:$0xff] %vm340, %v2858
        %2891 = vst.msk [vmem:[%s296 + $0xb0] sm:$0xff] %vm340, %v2859
        %2892 = vst.msk [vmem:[%s296 + $0xb8] sm:$0xff] %vm340, %v2860
        %2893 = vst.msk [vmem:[%s296 + $0xc0] sm:$0xff] %vm340, %v2861
        %2894 = vst.msk [vmem:[%s296 + $0xc8] sm:$0xff] %vm340, %v2862
        %2895 = vst.msk [vmem:[%s296 + $0xd0] sm:$0xff] %vm340, %v2863
        %2896 = vst.msk [vmem:[%s296 + $0xd8] sm:$0xff] %vm340, %v2864
        %2897 = vst.msk [vmem:[%s296 + $0xe0] sm:$0xff] %vm340, %v2865
        %2898 = vst.msk [vmem:[%s296 + $0xe8] sm:$0xff] %vm340, %v2866
        %2899 = vst.msk [vmem:[%s296 + $0xf0] sm:$0xff] %vm340, %v2867
        %2900 = vst.msk [vmem:[%s296 + $0xf8] sm:$0xff] %vm340, %v2868
        %s2901 = sand.u32 %s184, 1
        %s2902 = scalar_lea.sflag [#allocation5], %s2901
        %s2903 = sand.u32 %s184, 1
        %s2904 = smul.addr %s2903, 256
        %s2905 = scalar_lea.vmem [#allocation6], %s2904
        // Predicated region
        $region53: #{tpu_custom_call.1} parent=47 // pred_check
          %p2906 = pneg %p194
        $region54: #{tpu_custom_call.1} parent=47 // pred_check_branch
          %2908 = sbr.rel (%p2906) target = $region56
        $region55: #{tpu_custom_call.1} parent=47 // pred_region
          %s2910 = ssub.s32 4096, 4096
          %2911 = vsyncadd %s2902, %s2910
          %s2912 = smul.addr %s24, 32
          %s2913 = smul.addr %s2912, 128
          %s2914 = scalar_lea.hbm %s7, %s2913
          %s2915 = sshll.u32 %s2905, 4
          %s2916 = int_to_ptr.vmem [resolvable:$true] %s2915
          %2921 = dma.vmem_to_hbm [thread:$0]  %s2916, 4096, %s2914, %s2902, 128, 128, 8
        $region56: #{tpu_custom_call.1} parent=47 // pred_fallthru
          _
      $region48: #{tpu_custom_call.1} parent=5 // pred_fallthru
        _
      %p2922 = scmp.le.s32.totalorder 2, %s19
      // Predicated region
      $region57: #{tpu_custom_call.1} parent=5 // pred_check
        %p2923 = pneg %p2922
      $region58: #{tpu_custom_call.1} parent=5 // pred_check_branch
        %2925 = sbr.rel (%p2923) target = $region60
      $region59: #{tpu_custom_call.1} parent=5 // pred_region
        %s2926 = ssub.s32 %s19, 2
        // Predicated region
        $region61: #{tpu_custom_call.1} parent=59 // pred_check
          %p2927 = pneg %p200
        $region62: #{tpu_custom_call.1} parent=59 // pred_check_branch
          %2929 = sbr.rel (%p2927) target = $region64
        $region63: #{tpu_custom_call.1} parent=59 // pred_region
          %s2930 = sand.u32 %s185, 1
          %s2931 = scalar_lea.sflag [#allocation5], %s2930
          %s2932 = sand.u32 %s185, 1
          %s2933 = smul.addr %s2932, 256
          %s2934 = scalar_lea.vmem [#allocation6], %s2933
          %2935 = dma.done %s2931, 4096
        $region64: #{tpu_custom_call.1} parent=59 // pred_fallthru
          _
      $region60: #{tpu_custom_call.1} parent=5 // pred_fallthru
        _
    $region6: #{tpu_custom_call.1} parent=1 // loop_footer
      %s23 = sadd.s32 1, %s19
    $region7: #{tpu_custom_call.1} parent=1 // loop_footer_branch
      %18 = sbr.rel target = $region3
    $region8: #{tpu_custom_call.1} parent=1 // loop_exit
      _
    %2936 = vsyncpa [#allocation4], 1
    %s2937 = scalar_lea.sflag [#allocation4], 1
    %2938 = vsyncpa %s2937, 1
    %2939 = vsyncpa [#allocation5], 1
    %s2940 = scalar_lea.sflag [#allocation5], 1
    %2941 = vsyncpa %s2940, 1

</llo_original>
